<compile_context>
chip_gen: v5e
topology: v5e:2x2
jax: 0.10.0
libtpu: 0.0.40
codegen_flags: <defaults>
</compile_context>

<pallas_src>
import functools

import jax
import jax.numpy as jnp
from jax import lax
from jax.experimental import pallas as pl
from jax.experimental.pallas import tpu as pltpu


def _round_up(v, m):
    return ((v + m - 1) // m) * m


def _conv_block(xc, xl, xr, m, w3_ref, b3_ref, w1_ref, b1_ref, o_ref, *,
                dilation, halo, precision):
    """Shared per-tile compute.

    xc : (C, bt)  current time tile (also the residual / center tap)
    xl : (C, hb)  left halo  (already zeroed at the sequence start)
    xr : (C, hb)  right halo (already zeroed at the sequence end)
    m  : (1, bt)  mask channel 0
    """
    d, hb = dilation, halo
    bt = xc.shape[1]
    cdt = w3_ref.dtype  # matmul-input dtype (weights pre-cast in the wrapper)

    # Extended tile [left halo | tile | right halo]; the two conv taps are
    # plain static slices of it -- no roll, no iota masks, no (3C, bt) stack.
    ext = jnp.concatenate([xl, xc, xr], axis=1)              # (C, bt + 2*hb)
    x_prev = ext[:, hb - d: hb - d + bt].astype(cdt)          # x[t - d]
    x_next = ext[:, hb + d: hb + d + bt].astype(cdt)          # x[t + d]

    # Dilated 3-tap conv as three accumulating MXU passes (f32 accumulation).
    h = jnp.dot(w3_ref[0], x_prev,
                preferred_element_type=jnp.float32, precision=precision)
    h = h + jnp.dot(w3_ref[1], xc.astype(cdt),
                    preferred_element_type=jnp.float32, precision=precision)
    h = h + jnp.dot(w3_ref[2], x_next,
                    preferred_element_type=jnp.float32, precision=precision)
    h = jnp.maximum(h + b3_ref[...], 0.0)                     # bias + ReLU (f32)

    out = jnp.dot(w1_ref[...], h.astype(cdt),
                  preferred_element_type=jnp.float32, precision=precision)
    out = out + b1_ref[...]

    # TODO(synk): nn.Dropout treated as identity (eval semantics).
    res = xc.astype(jnp.float32)
    o_ref[...] = ((res + out) * m.astype(jnp.float32)).astype(o_ref.dtype)


def _kernel_tiled(x_ref, xl_ref, xr_ref, m_ref, w3_ref, b3_ref, w1_ref, b1_ref,
                  o_ref, *, dilation, halo, precision):
    """One grid step == one (batch element, time tile)."""
    j = pl.program_id(1)
    nt = pl.num_programs(1)
    # Zero the halos at the sequence boundaries: this both implements the
    # conv's zero padding and discards the garbage fetched by the clamped
    # halo index maps on the first / last tile.
    keep_l = (j > 0).astype(xl_ref.dtype)
    keep_r = (j < nt - 1).astype(xr_ref.dtype)
    xl = xl_ref[...] * keep_l
    xr = xr_ref[...] * keep_r
    _conv_block(x_ref[...], xl, xr, m_ref[...], w3_ref, b3_ref, w1_ref, b1_ref,
                o_ref, dilation=dilation, halo=halo, precision=precision)


def _kernel_single(x_ref, m_ref, w3_ref, b3_ref, w1_ref, b1_ref, o_ref, *,
                   dilation, halo, precision):
    """Fallback: whole sequence in one tile; halos are just zero padding."""
    C = x_ref.shape[0]
    zeros = jnp.zeros((C, halo), dtype=x_ref.dtype)
    _conv_block(x_ref[...], zeros, zeros, m_ref[...], w3_ref, b3_ref, w1_ref,
                b1_ref, o_ref, dilation=dilation, halo=halo, precision=precision)


def _choose_tiling(T, C, dilation, itemsize, *, batch, block_t=None,
                   vmem_block_budget=16 * 1024 * 1024):
    """Pick (block_t, halo) for the time-tiled path, or None -> single tile.

    Constraints: block_t | T, block_t % 128 == 0, halo | block_t,
    halo % 128 == 0, halo >= dilation, and >= 2 time tiles.
    The budget counts the double-buffered x/out/mask blocks plus the ~5
    C-wide f32 in-kernel temporaries (ext, two taps, h, out).
    """
    d = min(dilation, T)
    if block_t is None:
        if T % 128 != 0:
            return None
        per_col = 2 * 2 * C * itemsize + 2 * 4 + 5 * C * 4
        bt_cap = max(128, (vmem_block_budget // per_col) // 128 * 128)
        cand = min(T, bt_cap)
        if batch < 2 and T % 256 == 0:
            # Guarantee >= 2 grid steps on a parallel axis (v7x megacore).
            cand = min(cand, T // 2)
        bt = 0
        while cand >= 128:
            if T % cand == 0:
                bt = cand
                break
            cand -= 128
        if bt == 0:
            return None
    else:
        bt = int(block_t)
        if bt <= 0 or bt >= T or T % bt or bt % 128:
            return None  # silently fall back to the single-tile path
    # Halo block: smallest multiple of 128 that divides block_t and covers d.
    hb = 0
    cand = 128
    while cand <= bt:
        if bt % cand == 0 and cand >= d:
            hb = cand
            break
        cand += 128
    if hb == 0 or T // bt < 2:
        return None
    return bt, hb


def dilated_residual_layer(x, mask, w3, b3, w1, b1, *, dilation,
                           block_t=None, matmul_dtype=None,
                           vmem_limit_bytes=40 * 1024 * 1024):
    """Forward pass of DilatedResidualLayer.

    x    : (N, C, T) activations (float32 or bfloat16; output matches x.dtype).
    mask : (N, Cm, T); only channel 0 is used.
    w3   : (C, C, 3) dilated-conv weight, b3: (C,).
    w1   : (C, C, 1) or (C, C) 1x1-conv weight, b1: (C,).

    For the pure-bandwidth win on this HBM-bound op pass x in bfloat16:
    HBM bytes halve; matmuls run in bf16 with f32 accumulation and the
    elementwise tail stays f32.  The f32 path uses Precision.HIGHEST.
    """
    N, C, T = x.shape
    assert w3.shape == (C, C, 3), w3.shape
    assert w1.shape[:2] == (C, C), w1.shape
    assert mask.shape[0] == N and mask.shape[-1] == T, mask.shape

    if matmul_dtype is None:
        matmul_dtype = jnp.bfloat16 if x.dtype == jnp.bfloat16 else jnp.float32
    matmul_dtype = jnp.dtype(matmul_dtype)
    precision = (lax.Precision.HIGHEST if matmul_dtype == jnp.dtype(jnp.float32)
                 else lax.Precision.DEFAULT)

    # Cheap wrapper glue (no pad / copy of x):
    mask0 = mask[:, 0:1, :]                                    # (N, 1, T)
    w3_k = jnp.transpose(w3, (2, 0, 1)).astype(matmul_dtype)   # (3, C, C)
    w1_2d = w1.reshape(C, C).astype(matmul_dtype)               # (C, C)
    b3_c = b3.astype(jnp.float32).reshape(C, 1)
    b1_c = b1.astype(jnp.float32).reshape(C, 1)

    d_eff = min(int(dilation), T)   # taps >= T away only ever read zero padding
    itemsize = jnp.dtype(x.dtype).itemsize
    tiling = _choose_tiling(T, C, d_eff, itemsize, batch=N, block_t=block_t)

    def _const_specs(two_axes):
        if two_axes:
            c3 = lambda n, j: (0, 0, 0)
            c2 = lambda n, j: (0, 0)
        else:
            c3 = lambda n: (0, 0, 0)
            c2 = lambda n: (0, 0)
        return [pl.BlockSpec((3, C, C), c3), pl.BlockSpec((C, 1), c2),
                pl.BlockSpec((C, C), c2), pl.BlockSpec((C, 1), c2)]

    if tiling is not None:
        bt, hb = tiling
        nt = T // bt
        r = bt // hb
        nhb = T // hb
        kernel = functools.partial(_kernel_tiled, dilation=d_eff, halo=hb,
                                   precision=precision)
        grid = (N, nt)
        in_specs = [
            pl.BlockSpec((None, C, bt), lambda n, j: (n, 0, j)),      # x tile
            pl.BlockSpec((None, C, hb),                               # left halo
                         lambda n, j: (n, 0, jnp.maximum(j * r - 1, 0))),
            pl.BlockSpec((None, C, hb),                               # right halo
                         lambda n, j: (n, 0, jnp.minimum((j + 1) * r, nhb - 1))),
            pl.BlockSpec((None, 1, bt), lambda n, j: (n, 0, j)),      # mask ch0
        ] + _const_specs(True)
        out_spec = pl.BlockSpec((None, C, bt), lambda n, j: (n, 0, j))
        operands = (x, x, x, mask0, w3_k, b3_c, w1_2d, b1_c)
        dim_sem = ("parallel", "parallel")
    else:
        hb = max(128, _round_up(d_eff, 128))
        kernel = functools.partial(_kernel_single, dilation=d_eff, halo=hb,
                                   precision=precision)
        grid = (N,)
        in_specs = [
            pl.BlockSpec((None, C, T), lambda n: (n, 0, 0)),
            pl.BlockSpec((None, 1, T), lambda n: (n, 0, 0)),
        ] + _const_specs(False)
        out_spec = pl.BlockSpec((None, C, T), lambda n: (n, 0, 0))
        operands = (x, mask0, w3_k, b3_c, w1_2d, b1_c)
        dim_sem = ("parallel",)

    return pl.pallas_call(
        kernel,
        out_shape=jax.ShapeDtypeStruct((N, C, T), x.dtype),
        grid_spec=pltpu.PrefetchScalarGridSpec(
            num_scalar_prefetch=0,
            grid=grid,
            in_specs=in_specs,
            out_specs=out_spec,
        ),
        compiler_params=pltpu.CompilerParams(
            dimension_semantics=dim_sem,
            vmem_limit_bytes=vmem_limit_bytes),
    )(*operands)


if __name__ == "__main__":
    key = jax.random.PRNGKey(0)

    def make_inputs(k, N, C, T):
        kx, km, k3w, k3b, k1w, k1b = jax.random.split(k, 6)
        x = jax.random.normal(kx, (N, C, T), dtype=jnp.float32)
        mask = (jax.random.uniform(km, (N, C, T)) > 0.3).astype(jnp.float32)
        w3 = 0.1 * jax.random.normal(k3w, (C, C, 3), dtype=jnp.float32)
        b3 = 0.1 * jax.random.normal(k3b, (C,), dtype=jnp.float32)
        w1 = 0.1 * jax.random.normal(k1w, (C, C, 1), dtype=jnp.float32)
        b1 = 0.1 * jax.random.normal(k1b, (C,), dtype=jnp.float32)
        return x, mask, w3, b3, w1, b1

    def reference(x, mask, w3, b3, w1, b1, dilation):
        hp = lax.Precision.HIGHEST
        conv_d = lax.conv_general_dilated(
            x, w3, window_strides=(1,), padding=[(dilation, dilation)],
            rhs_dilation=(dilation,), dimension_numbers=("NCH", "OIH", "NCH"),
            precision=hp)
        h = jax.nn.relu(conv_d + b3[None, :, None])
        conv_1 = lax.conv_general_dilated(
            h, w1, window_strides=(1,), padding=[(0, 0)],
            dimension_numbers=("NCH", "OIH", "NCH"), precision=hp)
        return (x + conv_1 + b1[None, :, None]) * mask[:, 0:1, :]

    k1, k2, k3 = jax.random.split(key, 3)

    # 1) Time-tiled halo path: grid (2 batch x 2 time tiles), halo = 128.
    x, mask, w3, b3, w1, b1 = make_inputs(k1, 2, 16, 512)
    out = dilated_residual_layer(x, mask, w3, b3, w1, b1, dilation=2,
                                 block_t=256)
    jax.block_until_ready(out)
    ref = reference(x, mask, w3, b3, w1, b1, 2)
    assert jnp.allclose(out, ref, atol=1e-4, rtol=1e-4), "tiled path mismatch"

    # 2) Single-tile fallback path with a larger dilation.
    x, mask, w3, b3, w1, b1 = make_inputs(k2, 2, 8, 256)
    out = dilated_residual_layer(x, mask, w3, b3, w1, b1, dilation=64)
    jax.block_until_ready(out)
    ref = reference(x, mask, w3, b3, w1, b1, 64)
    assert jnp.allclose(out, ref, atol=1e-4, rtol=1e-4), "single-tile mismatch"

    # 3) bf16 activation I/O path (f32 accumulation inside; loose tolerance).
    x, mask, w3, b3, w1, b1 = make_inputs(k3, 2, 16, 512)
    out_bf = dilated_residual_layer(x.astype(jnp.bfloat16), mask, w3, b3, w1, b1,
                                    dilation=2, block_t=256)
    jax.block_until_ready(out_bf)
    ref = reference(x, mask, w3, b3, w1, b1, 2)
    assert out_bf.dtype == jnp.bfloat16
    assert jnp.allclose(out_bf.astype(jnp.float32), ref, atol=0.1, rtol=0.1), \
        "bf16 path mismatch"

    print("KERNEL_OK")
</pallas_src>

<mosaic_0001>
module attributes {stable_mosaic.version = 11 : i64} {
  func.func @_kernel_tiled(%arg0: i32, %arg1: i32, %arg2: memref<1x16x256xf32, #tpu.memory_space<vmem>>, %arg3: memref<1x16x128xf32, #tpu.memory_space<vmem>>, %arg4: memref<1x16x128xf32, #tpu.memory_space<vmem>>, %arg5: memref<1x1x256xf32, #tpu.memory_space<vmem>>, %arg6: memref<3x16x16xf32, #tpu.memory_space<vmem>>, %arg7: memref<16x1xf32, #tpu.memory_space<vmem>>, %arg8: memref<16x16xf32, #tpu.memory_space<vmem>>, %arg9: memref<16x1xf32, #tpu.memory_space<vmem>>, %arg10: memref<1x16x256xf32, #tpu.memory_space<vmem>>) attributes {dimension_semantics = [#tpu.dimension_semantics<parallel>, #tpu.dimension_semantics<parallel>], iteration_bounds = array<i64: 2, 2>, scalar_prefetch = 0 : i64, scratch_operands = 0 : i64, tpu.core_type = #tpu.core_type<tc>, window_params = [{transform_indices = @transform_0, window_bounds = array<i64: 1, 16, 256>}, {transform_indices = @transform_1, window_bounds = array<i64: 1, 16, 128>}, {transform_indices = @transform_2, window_bounds = array<i64: 1, 16, 128>}, {transform_indices = @transform_3, window_bounds = array<i64: 1, 1, 256>}, {pipeline_mode = #tpu.pipeline_mode<synchronous>, transform_indices = @transform_4, window_bounds = array<i64: 3, 16, 16>}, {pipeline_mode = #tpu.pipeline_mode<synchronous>, transform_indices = @transform_5, window_bounds = array<i64: 16, 1>}, {pipeline_mode = #tpu.pipeline_mode<synchronous>, transform_indices = @transform_6, window_bounds = array<i64: 16, 16>}, {pipeline_mode = #tpu.pipeline_mode<synchronous>, transform_indices = @transform_7, window_bounds = array<i64: 16, 1>}, {transform_indices = @transform_8, window_bounds = array<i64: 1, 16, 256>}]} {
    %c0_i32 = arith.constant 0 : i32
    %0 = arith.cmpi sgt, %arg1, %c0_i32 : i32
    %1 = arith.extui %0 : i1 to i32
    %2 = arith.sitofp %1 : i32 to f32
    %c1_i32 = arith.constant 1 : i32
    %3 = arith.cmpi slt, %arg1, %c1_i32 : i32
    %4 = arith.extui %3 : i1 to i32
    %5 = arith.sitofp %4 : i32 to f32
    %c0 = arith.constant 0 : index
    %c0_0 = arith.constant 0 : index
    %c0_1 = arith.constant 0 : index
    %6 = vector.load %arg3[%c0, %c0_0, %c0_1] : memref<1x16x128xf32, #tpu.memory_space<vmem>>, vector<1x16x128xf32>
    %7 = vector.shape_cast %6 : vector<1x16x128xf32> to vector<16x128xf32>
    %8 = vector.broadcast %2 : f32 to vector<16x128xf32>
    %9 = arith.mulf %7, %8 : vector<16x128xf32>
    %c0_2 = arith.constant 0 : index
    %c0_3 = arith.constant 0 : index
    %c0_4 = arith.constant 0 : index
    %10 = vector.load %arg4[%c0_2, %c0_3, %c0_4] : memref<1x16x128xf32, #tpu.memory_space<vmem>>, vector<1x16x128xf32>
    %11 = vector.shape_cast %10 : vector<1x16x128xf32> to vector<16x128xf32>
    %12 = vector.broadcast %5 : f32 to vector<16x128xf32>
    %13 = arith.mulf %11, %12 : vector<16x128xf32>
    %c0_5 = arith.constant 0 : index
    %c0_6 = arith.constant 0 : index
    %c0_7 = arith.constant 0 : index
    %14 = vector.load %arg2[%c0_5, %c0_6, %c0_7] : memref<1x16x256xf32, #tpu.memory_space<vmem>>, vector<1x16x256xf32>
    %15 = vector.shape_cast %14 : vector<1x16x256xf32> to vector<16x256xf32>
    %c0_8 = arith.constant 0 : index
    %c0_9 = arith.constant 0 : index
    %c0_10 = arith.constant 0 : index
    %16 = vector.load %arg5[%c0_8, %c0_9, %c0_10] : memref<1x1x256xf32, #tpu.memory_space<vmem>>, vector<1x1x256xf32>
    %17 = vector.shape_cast %16 : vector<1x1x256xf32> to vector<1x256xf32>
    %18 = tpu.concatenate %9, %15, %13 in 1 : vector<16x128xf32>, vector<16x256xf32>, vector<16x128xf32> -> vector<16x512xf32>
    %19 = vector.extract_strided_slice %18 {offsets = [0, 126], sizes = [16, 256], strides = [1, 1]} : vector<16x512xf32> to vector<16x256xf32>
    %20 = vector.extract_strided_slice %18 {offsets = [0, 130], sizes = [16, 256], strides = [1, 1]} : vector<16x512xf32> to vector<16x256xf32>
    %c0_11 = arith.constant 0 : index
    %c0_12 = arith.constant 0 : index
    %c0_13 = arith.constant 0 : index
    %21 = vector.load %arg6[%c0_11, %c0_12, %c0_13] : memref<3x16x16xf32, #tpu.memory_space<vmem>>, vector<1x16x16xf32>
    %22 = vector.shape_cast %21 : vector<1x16x16xf32> to vector<16x16xf32>
    %cst = arith.constant dense<0.000000e+00> : vector<16x256xf32>
    %23 = tpu.matmul %22, %19, %cst {dimension_numbers = #tpu.dot_dimension_numbers<[1], [0], [0], [1], [0, 0, 1, 1], [], []>, precision = #tpu.contract_precision<fp32>} : vector<16x16xf32>, vector<16x256xf32>, vector<16x256xf32> -> vector<16x256xf32>
    %c1 = arith.constant 1 : index
    %c0_14 = arith.constant 0 : index
    %c0_15 = arith.constant 0 : index
    %24 = vector.load %arg6[%c1, %c0_14, %c0_15] : memref<3x16x16xf32, #tpu.memory_space<vmem>>, vector<1x16x16xf32>
    %25 = vector.shape_cast %24 : vector<1x16x16xf32> to vector<16x16xf32>
    %cst_16 = arith.constant dense<0.000000e+00> : vector<16x256xf32>
    %26 = tpu.matmul %25, %15, %cst_16 {dimension_numbers = #tpu.dot_dimension_numbers<[1], [0], [0], [1], [0, 0, 1, 1], [], []>, precision = #tpu.contract_precision<fp32>} : vector<16x16xf32>, vector<16x256xf32>, vector<16x256xf32> -> vector<16x256xf32>
    %27 = arith.addf %23, %26 : vector<16x256xf32>
    %c2 = arith.constant 2 : index
    %c0_17 = arith.constant 0 : index
    %c0_18 = arith.constant 0 : index
    %28 = vector.load %arg6[%c2, %c0_17, %c0_18] : memref<3x16x16xf32, #tpu.memory_space<vmem>>, vector<1x16x16xf32>
    %29 = vector.shape_cast %28 : vector<1x16x16xf32> to vector<16x16xf32>
    %cst_19 = arith.constant dense<0.000000e+00> : vector<16x256xf32>
    %30 = tpu.matmul %29, %20, %cst_19 {dimension_numbers = #tpu.dot_dimension_numbers<[1], [0], [0], [1], [0, 0, 1, 1], [], []>, precision = #tpu.contract_precision<fp32>} : vector<16x16xf32>, vector<16x256xf32>, vector<16x256xf32> -> vector<16x256xf32>
    %31 = arith.addf %27, %30 : vector<16x256xf32>
    %c0_20 = arith.constant 0 : index
    %c0_21 = arith.constant 0 : index
    %32 = vector.load %arg7[%c0_20, %c0_21] : memref<16x1xf32, #tpu.memory_space<vmem>>, vector<16x1xf32>
    %33 = vector.broadcast %32 : vector<16x1xf32> to vector<16x256xf32>
    %34 = arith.addf %31, %33 : vector<16x256xf32>
    %cst_22 = arith.constant 0.000000e+00 : f32
    %35 = vector.broadcast %cst_22 : f32 to vector<16x256xf32>
    %36 = arith.maximumf %34, %35 : vector<16x256xf32>
    %c0_23 = arith.constant 0 : index
    %c0_24 = arith.constant 0 : index
    %37 = vector.load %arg8[%c0_23, %c0_24] : memref<16x16xf32, #tpu.memory_space<vmem>>, vector<16x16xf32>
    %cst_25 = arith.constant dense<0.000000e+00> : vector<16x256xf32>
    %38 = tpu.matmul %37, %36, %cst_25 {dimension_numbers = #tpu.dot_dimension_numbers<[1], [0], [0], [1], [0, 0, 1, 1], [], []>, precision = #tpu.contract_precision<fp32>} : vector<16x16xf32>, vector<16x256xf32>, vector<16x256xf32> -> vector<16x256xf32>
    %c0_26 = arith.constant 0 : index
    %c0_27 = arith.constant 0 : index
    %39 = vector.load %arg9[%c0_26, %c0_27] : memref<16x1xf32, #tpu.memory_space<vmem>>, vector<16x1xf32>
    %40 = vector.broadcast %39 : vector<16x1xf32> to vector<16x256xf32>
    %41 = arith.addf %38, %40 : vector<16x256xf32>
    %42 = arith.addf %15, %41 : vector<16x256xf32>
    %43 = vector.broadcast %17 : vector<1x256xf32> to vector<16x256xf32>
    %44 = arith.mulf %42, %43 : vector<16x256xf32>
    %c0_28 = arith.constant 0 : index
    %c0_29 = arith.constant 0 : index
    %c0_30 = arith.constant 0 : index
    %45 = vector.load %arg10[%c0_28, %c0_29, %c0_30] : memref<1x16x256xf32, #tpu.memory_space<vmem>>, vector<1x16x256xf32>
    %46 = vector.shape_cast %45 : vector<1x16x256xf32> to vector<16x256xf32>
    %47 = vector.shape_cast %44 : vector<16x256xf32> to vector<1x16x256xf32>
    tpu.vector_store %arg10[%c0_28, %c0_29, %c0_30], %47 {strides = array<i32>} : memref<1x16x256xf32, #tpu.memory_space<vmem>>, vector<1x16x256xf32>,
    return
  }
  func.func @transform_0(%arg0: i32, %arg1: i32) -> (i32, i32, i32) {
    %c0_i32 = arith.constant 0 : i32
    %c0_i32_0 = arith.constant 0 : i32
    return %arg0, %c0_i32, %arg1 : i32, i32, i32
  }
  func.func @transform_1(%arg0: i32, %arg1: i32) -> (i32, i32, i32) {
    %c2_i32 = arith.constant 2 : i32
    %0 = arith.muli %arg1, %c2_i32 : i32
    %c1_i32 = arith.constant 1 : i32
    %1 = arith.subi %0, %c1_i32 : i32
    %c0_i32 = arith.constant 0 : i32
    %2 = arith.maxsi %1, %c0_i32 : i32
    %c0_i32_0 = arith.constant 0 : i32
    %c0_i32_1 = arith.constant 0 : i32
    return %arg0, %c0_i32_0, %2 : i32, i32, i32
  }
  func.func @transform_2(%arg0: i32, %arg1: i32) -> (i32, i32, i32) {
    %c1_i32 = arith.constant 1 : i32
    %0 = arith.addi %arg1, %c1_i32 : i32
    %c2_i32 = arith.constant 2 : i32
    %1 = arith.muli %0, %c2_i32 : i32
    %c3_i32 = arith.constant 3 : i32
    %2 = arith.minsi %1, %c3_i32 : i32
    %c0_i32 = arith.constant 0 : i32
    %c0_i32_0 = arith.constant 0 : i32
    return %arg0, %c0_i32, %2 : i32, i32, i32
  }
  func.func @transform_3(%arg0: i32, %arg1: i32) -> (i32, i32, i32) {
    %c0_i32 = arith.constant 0 : i32
    %c0_i32_0 = arith.constant 0 : i32
    return %arg0, %c0_i32, %arg1 : i32, i32, i32
  }
  func.func @transform_4(%arg0: i32, %arg1: i32) -> (i32, i32, i32) {
    %c0_i32 = arith.constant 0 : i32
    %c0_i32_0 = arith.constant 0 : i32
    %c0_i32_1 = arith.constant 0 : i32
    %c0_i32_2 = arith.constant 0 : i32
    return %c0_i32, %c0_i32_0, %c0_i32_1 : i32, i32, i32
  }
  func.func @transform_5(%arg0: i32, %arg1: i32) -> (i32, i32) {
    %c0_i32 = arith.constant 0 : i32
    %c0_i32_0 = arith.constant 0 : i32
    %c0_i32_1 = arith.constant 0 : i32
    return %c0_i32, %c0_i32_0 : i32, i32
  }
  func.func @transform_6(%arg0: i32, %arg1: i32) -> (i32, i32) {
    %c0_i32 = arith.constant 0 : i32
    %c0_i32_0 = arith.constant 0 : i32
    %c0_i32_1 = arith.constant 0 : i32
    return %c0_i32, %c0_i32_0 : i32, i32
  }
  func.func @transform_7(%arg0: i32, %arg1: i32) -> (i32, i32) {
    %c0_i32 = arith.constant 0 : i32
    %c0_i32_0 = arith.constant 0 : i32
    %c0_i32_1 = arith.constant 0 : i32
    return %c0_i32, %c0_i32_0 : i32, i32
  }
  func.func @transform_8(%arg0: i32, %arg1: i32) -> (i32, i32, i32) {
    %c0_i32 = arith.constant 0 : i32
    %c0_i32_0 = arith.constant 0 : i32
    return %arg0, %c0_i32, %arg1 : i32, i32, i32
  }
}

</mosaic_0001>

<llo_original>
// kernel: tpu_custom_call.1
$region0: #{tpu_custom_call.1}
  #allocation0 [shape = 'u32[]', space=smem, size = 0x4, offset = 0x4, fixed_abs, tag = 'smem constant byte address 0x4 - core index']
  #allocation1 [shape = 'u32[72,128]{1,0:T(1,128)}', space=vmem, size = 0x9000, scoped, tag = 'internal scratch']
  %s0 = inlined_call_operand.hbm [shape: f32[2,16,512], index: 0, kind: input, shape index: {}]
  %s1 = inlined_call_operand.hbm [shape: f32[2,16,512], index: 1, kind: input, shape index: {}]
  %s2 = inlined_call_operand.hbm [shape: f32[2,16,512], index: 2, kind: input, shape index: {}]
  %s3 = inlined_call_operand.vmem [shape: f32[2,1,512], index: 3, kind: input, shape index: {}]
  %s4 = inlined_call_operand.hbm [shape: f32[3,16,16], index: 4, kind: input, shape index: {}]
  %s5 = inlined_call_operand.vmem [shape: f32[16,1], index: 5, kind: input, shape index: {}]
  %s6 = inlined_call_operand.vmem [shape: f32[16,16], index: 6, kind: input, shape index: {}]
  %s7 = inlined_call_operand.vmem [shape: f32[16,1], index: 7, kind: input, shape index: {}]
  %s8 = inlined_call_operand.hbm [shape: f32[2,16,512], index: 8, kind: output, shape index: {}]
  %s9 = sld [smem:[#allocation0]]
  $region81: #{tpu_custom_call.1} parent=0
    _
  %s11 = ssub.s32 1, %s9
  %s12 = scalar_select 0, %s11, %s9
  $region1: #{tpu_custom_call.1} parent=0
    #allocation2 [shape = 'u8[32768]{0}', space=vmem, size = 0x8000, scoped, tag = 'input window, operand 0']
    #allocation3 [shape = 's32[2]{0}', space=sflag, size = 0x8, scoped, tag = 'scoped memory for tpu_custom_call.1']
    #allocation4 [shape = 's32[2]{0}', space=sflag, size = 0x8, scoped, tag = 'scoped memory for tpu_custom_call.1']
    #allocation5 [shape = 'u8[16384]{0}', space=vmem, size = 0x4000, scoped, tag = 'input window, operand 1']
    #allocation6 [shape = 's32[2]{0}', space=sflag, size = 0x8, scoped, tag = 'scoped memory for tpu_custom_call.1']
    #allocation7 [shape = 'u8[16384]{0}', space=vmem, size = 0x4000, scoped, tag = 'input window, operand 2']
    #allocation8 [shape = 'u8[24576]{0}', space=vmem, size = 0x6000, scoped, tag = 'input window, operand 4, single buffered']
    #allocation9 [shape = 's32[1]{0}', space=sflag, size = 0x4, scoped, tag = 'scoped memory for tpu_custom_call.1']
    #allocation10 [shape = 'u8[32768]{0}', space=vmem, size = 0x8000, scoped, tag = 'output window, operand 0']
    %13 = vsyncpa [#allocation3], 0
    %s14 = scalar_lea.sflag [#allocation3], 1
    %15 = vsyncpa %s14, 0
    %16 = vsyncpa [#allocation6], 0
    %s17 = scalar_lea.sflag [#allocation6], 1
    %18 = vsyncpa %s17, 0
    %19 = vsyncpa [#allocation9], 0
    %20 = vsyncpa [#allocation4], 0
    %s21 = scalar_lea.sflag [#allocation4], 1
    %22 = vsyncpa %s21, 0
    loop: start=0, step=1, limit=6
    $region2: #{tpu_custom_call.1} parent=1 // loop_pre_header
      _
    $region3: #{tpu_custom_call.1} parent=1 // loop_header
      %s24 = sphi 0, %s28
      %p25 = scmp.ge.s32.totalorder %s24, 6
      %s31 = sphi 0, %s43
      %s32 = sphi 0, %s39
      %s33 = sphi 0, %s31
      %s34 = sphi 0, %s32
      %s35 = sphi 0, %s33
      %s36 = sphi 0, %s34
      %s48 = sphi 0, %s50
      %s51 = sphi 0, %s48
      %s52 = sphi 0, %s51
      %s68 = sphi 0, %s52
      %s84 = sphi 0, %s86
      %s87 = sphi 0, %s84
      %s88 = sphi 0, %s87
      %s104 = sphi 0, %s88
      %s120 = sphi 0, %s122
      %s123 = sphi 0, %s120
      %s124 = sphi 0, %s123
      %s140 = sphi 0, %s124
      %s148 = sphi 0, %s150
      %s151 = sphi 0, %s148
      %s152 = sphi 0, %s151
      %s168 = sphi 0, %s152
      %s172 = sphi 0, %s172
      %s174 = sphi 0, %s172
      %s175 = sphi 0, %s174
      %s189 = sphi 0, %s175
      %s193 = sphi 0, %s193
      %s195 = sphi 0, %s193
      %s196 = sphi 0, %s195
      %s210 = sphi 0, %s196
      %s214 = sphi 0, %s214
      %s216 = sphi 0, %s214
      %s217 = sphi 0, %s216
      %s231 = sphi 0, %s217
      %s235 = sphi 0, %s235
      %s237 = sphi 0, %s235
      %s238 = sphi 0, %s237
      %s252 = sphi 0, %s238
      %s260 = sphi 0, %s262
      %s263 = sphi 0, %s260
      %s264 = sphi 0, %s263
      %s280 = sphi 0, %s264
    $region4: #{tpu_custom_call.1} parent=1 // loop_header_branch
      %27 = sbr.rel (%p25) target = $region8
    $region5: #{tpu_custom_call.1} parent=1 // loop_body
      %s29 = ssub.s32 %s24, 1
      %s30 = ssub.s32 %s24, 2
      %s37 = sadd.s32 1, %s32
      %p38 = scmp.ge.s32.totalorder %s37, 2
      %s39 = scalar_select %p38, 0, %s37
      %s40 = sadd.s32 1, %s31
      %s41 = scalar_select %p38, %s40, %s31
      %p42 = scmp.ge.s32.totalorder %s41, 2
      %s43 = scalar_select %p42, 0, %s41
      %s44 = ssub.s32 %s31, %s43
      %s45 = ssub.s32 %s32, %s39
      %s46 = sor.u32 %s44, %s45
      %p47 = scmp.eq.s32.totalorder %s46, 0
      %s49 = sadd.s32 %s48, 1
      %s50 = scalar_select %p47, %s48, %s49
      %p53 = pneg %p47
      %p54 = scmp.eq.s32.totalorder %s24, 3
      %p55 = por %p53, %p54
      %p56 = scmp.ne.s32.totalorder %s48, %s51
      %p57 = scmp.eq.s32.totalorder %s24, 0
      %p58 = por %p56, %p57
      %p59 = scmp.ne.s32.totalorder %s48, %s51
      %p60 = scmp.eq.s32.totalorder %s29, 3
      %p61 = por %p59, %p60
      %p62 = scmp.ne.s32.totalorder %s51, %s52
      %p63 = scmp.eq.s32.totalorder %s29, 0
      %p64 = por %p62, %p63
      %p65 = scmp.ne.s32.totalorder %s51, %s52
      %p66 = scmp.eq.s32.totalorder %s30, 3
      %p67 = por %p65, %p66
      %p69 = scmp.ne.s32.totalorder %s52, %s68
      %p70 = scmp.eq.s32.totalorder %s30, 0
      %p71 = por %p69, %p70
      %s72 = smul.u32 %s32, 2
      %s73 = ssub.s32 %s72, 1
      %p74 = scmp.gt.s32.totalorder %s73, 0
      %s75 = scalar_select %p74, %s73, 0
      %s76 = smul.u32 %s39, 2
      %s77 = ssub.s32 %s76, 1
      %p78 = scmp.gt.s32.totalorder %s77, 0
      %s79 = scalar_select %p78, %s77, 0
      %s80 = ssub.s32 %s31, %s43
      %s81 = ssub.s32 %s75, %s79
      %s82 = sor.u32 %s80, %s81
      %p83 = scmp.eq.s32.totalorder %s82, 0
      %s85 = sadd.s32 %s84, 1
      %s86 = scalar_select %p83, %s84, %s85
      %p89 = pneg %p83
      %p90 = scmp.eq.s32.totalorder %s24, 3
      %p91 = por %p89, %p90
      %p92 = scmp.ne.s32.totalorder %s84, %s87
      %p93 = scmp.eq.s32.totalorder %s24, 0
      %p94 = por %p92, %p93
      %p95 = scmp.ne.s32.totalorder %s84, %s87
      %p96 = scmp.eq.s32.totalorder %s29, 3
      %p97 = por %p95, %p96
      %p98 = scmp.ne.s32.totalorder %s87, %s88
      %p99 = scmp.eq.s32.totalorder %s29, 0
      %p100 = por %p98, %p99
      %p101 = scmp.ne.s32.totalorder %s87, %s88
      %p102 = scmp.eq.s32.totalorder %s30, 3
      %p103 = por %p101, %p102
      %p105 = scmp.ne.s32.totalorder %s88, %s104
      %p106 = scmp.eq.s32.totalorder %s30, 0
      %p107 = por %p105, %p106
      %s108 = sadd.s32 %s32, 1
      %s109 = smul.u32 %s108, 2
      %p110 = scmp.lt.s32.totalorder %s109, 3
      %s111 = scalar_select %p110, %s109, 3
      %s112 = sadd.s32 %s39, 1
      %s113 = smul.u32 %s112, 2
      %p114 = scmp.lt.s32.totalorder %s113, 3
      %s115 = scalar_select %p114, %s113, 3
      %s116 = ssub.s32 %s31, %s43
      %s117 = ssub.s32 %s111, %s115
      %s118 = sor.u32 %s116, %s117
      %p119 = scmp.eq.s32.totalorder %s118, 0
      %s121 = sadd.s32 %s120, 1
      %s122 = scalar_select %p119, %s120, %s121
      %p125 = pneg %p119
      %p126 = scmp.eq.s32.totalorder %s24, 3
      %p127 = por %p125, %p126
      %p128 = scmp.ne.s32.totalorder %s120, %s123
      %p129 = scmp.eq.s32.totalorder %s24, 0
      %p130 = por %p128, %p129
      %p131 = scmp.ne.s32.totalorder %s120, %s123
      %p132 = scmp.eq.s32.totalorder %s29, 3
      %p133 = por %p131, %p132
      %p134 = scmp.ne.s32.totalorder %s123, %s124
      %p135 = scmp.eq.s32.totalorder %s29, 0
      %p136 = por %p134, %p135
      %p137 = scmp.ne.s32.totalorder %s123, %s124
      %p138 = scmp.eq.s32.totalorder %s30, 3
      %p139 = por %p137, %p138
      %p141 = scmp.ne.s32.totalorder %s124, %s140
      %p142 = scmp.eq.s32.totalorder %s30, 0
      %p143 = por %p141, %p142
      %s144 = ssub.s32 %s31, %s43
      %s145 = ssub.s32 %s32, %s39
      %s146 = sor.u32 %s144, %s145
      %p147 = scmp.eq.s32.totalorder %s146, 0
      %s149 = sadd.s32 %s148, 1
      %s150 = scalar_select %p147, %s148, %s149
      %p153 = pneg %p147
      %p154 = scmp.eq.s32.totalorder %s24, 3
      %p155 = por %p153, %p154
      %p156 = scmp.ne.s32.totalorder %s148, %s151
      %p157 = scmp.eq.s32.totalorder %s24, 0
      %p158 = por %p156, %p157
      %p159 = scmp.ne.s32.totalorder %s148, %s151
      %p160 = scmp.eq.s32.totalorder %s29, 3
      %p161 = por %p159, %p160
      %p162 = scmp.ne.s32.totalorder %s151, %s152
      %p163 = scmp.eq.s32.totalorder %s29, 0
      %p164 = por %p162, %p163
      %p165 = scmp.ne.s32.totalorder %s151, %s152
      %p166 = scmp.eq.s32.totalorder %s30, 3
      %p167 = por %p165, %p166
      %p169 = scmp.ne.s32.totalorder %s152, %s168
      %p170 = scmp.eq.s32.totalorder %s30, 0
      %p171 = por %p169, %p170
      %s173 = sadd.s32 %s172, 1
      %p176 = scmp.eq.s32.totalorder %s24, 3
      %p177 = scmp.ne.s32.totalorder %s172, %s174
      %p178 = scmp.eq.s32.totalorder %s24, 0
      %p179 = por %p177, %p178
      %p180 = scmp.ne.s32.totalorder %s172, %s174
      %p181 = scmp.eq.s32.totalorder %s29, 3
      %p182 = por %p180, %p181
      %p183 = scmp.ne.s32.totalorder %s174, %s175
      %p184 = scmp.eq.s32.totalorder %s29, 0
      %p185 = por %p183, %p184
      %p186 = scmp.ne.s32.totalorder %s174, %s175
      %p187 = scmp.eq.s32.totalorder %s30, 3
      %p188 = por %p186, %p187
      %p190 = scmp.ne.s32.totalorder %s175, %s189
      %p191 = scmp.eq.s32.totalorder %s30, 0
      %p192 = por %p190, %p191
      %s194 = sadd.s32 %s193, 1
      %p197 = scmp.eq.s32.totalorder %s24, 3
      %p198 = scmp.ne.s32.totalorder %s193, %s195
      %p199 = scmp.eq.s32.totalorder %s24, 0
      %p200 = por %p198, %p199
      %p201 = scmp.ne.s32.totalorder %s193, %s195
      %p202 = scmp.eq.s32.totalorder %s29, 3
      %p203 = por %p201, %p202
      %p204 = scmp.ne.s32.totalorder %s195, %s196
      %p205 = scmp.eq.s32.totalorder %s29, 0
      %p206 = por %p204, %p205
      %p207 = scmp.ne.s32.totalorder %s195, %s196
      %p208 = scmp.eq.s32.totalorder %s30, 3
      %p209 = por %p207, %p208
      %p211 = scmp.ne.s32.totalorder %s196, %s210
      %p212 = scmp.eq.s32.totalorder %s30, 0
      %p213 = por %p211, %p212
      %s215 = sadd.s32 %s214, 1
      %p218 = scmp.eq.s32.totalorder %s24, 3
      %p219 = scmp.ne.s32.totalorder %s214, %s216
      %p220 = scmp.eq.s32.totalorder %s24, 0
      %p221 = por %p219, %p220
      %p222 = scmp.ne.s32.totalorder %s214, %s216
      %p223 = scmp.eq.s32.totalorder %s29, 3
      %p224 = por %p222, %p223
      %p225 = scmp.ne.s32.totalorder %s216, %s217
      %p226 = scmp.eq.s32.totalorder %s29, 0
      %p227 = por %p225, %p226
      %p228 = scmp.ne.s32.totalorder %s216, %s217
      %p229 = scmp.eq.s32.totalorder %s30, 3
      %p230 = por %p228, %p229
      %p232 = scmp.ne.s32.totalorder %s217, %s231
      %p233 = scmp.eq.s32.totalorder %s30, 0
      %p234 = por %p232, %p233
      %s236 = sadd.s32 %s235, 1
      %p239 = scmp.eq.s32.totalorder %s24, 3
      %p240 = scmp.ne.s32.totalorder %s235, %s237
      %p241 = scmp.eq.s32.totalorder %s24, 0
      %p242 = por %p240, %p241
      %p243 = scmp.ne.s32.totalorder %s235, %s237
      %p244 = scmp.eq.s32.totalorder %s29, 3
      %p245 = por %p243, %p244
      %p246 = scmp.ne.s32.totalorder %s237, %s238
      %p247 = scmp.eq.s32.totalorder %s29, 0
      %p248 = por %p246, %p247
      %p249 = scmp.ne.s32.totalorder %s237, %s238
      %p250 = scmp.eq.s32.totalorder %s30, 3
      %p251 = por %p249, %p250
      %p253 = scmp.ne.s32.totalorder %s238, %s252
      %p254 = scmp.eq.s32.totalorder %s30, 0
      %p255 = por %p253, %p254
      %s256 = ssub.s32 %s31, %s43
      %s257 = ssub.s32 %s32, %s39
      %s258 = sor.u32 %s256, %s257
      %p259 = scmp.eq.s32.totalorder %s258, 0
      %s261 = sadd.s32 %s260, 1
      %s262 = scalar_select %p259, %s260, %s261
      %p265 = pneg %p259
      %p266 = scmp.eq.s32.totalorder %s24, 3
      %p267 = por %p265, %p266
      %p268 = scmp.ne.s32.totalorder %s260, %s263
      %p269 = scmp.eq.s32.totalorder %s24, 0
      %p270 = por %p268, %p269
      %p271 = scmp.ne.s32.totalorder %s260, %s263
      %p272 = scmp.eq.s32.totalorder %s29, 3
      %p273 = por %p271, %p272
      %p274 = scmp.ne.s32.totalorder %s263, %s264
      %p275 = scmp.eq.s32.totalorder %s29, 0
      %p276 = por %p274, %p275
      %p277 = scmp.ne.s32.totalorder %s263, %s264
      %p278 = scmp.eq.s32.totalorder %s30, 3
      %p279 = por %p277, %p278
      %p281 = scmp.ne.s32.totalorder %s264, %s280
      %p282 = scmp.eq.s32.totalorder %s30, 0
      %p283 = por %p281, %p282
      %p284 = scmp.le.s32.totalorder 1, %s24
      %p285 = scmp.lt.s32.totalorder %s24, 5
      %p286 = pnand %p284, %p285
      %p287 = pneg %p286
      // Predicated region
      $region9: #{tpu_custom_call.1} parent=5 // pred_check
        _
      $region10: #{tpu_custom_call.1} parent=5 // pred_check_branch
        %289 = sbr.rel (%p286) target = $region12
      $region11: #{tpu_custom_call.1} parent=5 // pred_region
        %s290 = ssub.s32 %s24, 1
        // Predicated region
        $region13: #{tpu_custom_call.1} parent=11 // pred_check
          %p291 = pneg %p185
        $region14: #{tpu_custom_call.1} parent=11 // pred_check_branch
          %293 = sbr.rel (%p291) target = $region16
        $region15: #{tpu_custom_call.1} parent=11 // pred_region
          %295 = vsyncadd [#allocation9], 0
          %s296 = sshll.u32 %s4, 4
          %s297 = int_to_ptr.hbm [resolvable:$true] %s296
          %s298 = sshll.u32 [#allocation8], 4
          %s299 = int_to_ptr.vmem [resolvable:$true] %s298
          %304 = dma.hbm_to_vmem [thread:$0]  %s297, 768, %s299, [#allocation9], 128, 128, 8
        $region16: #{tpu_custom_call.1} parent=11 // pred_fallthru
          _
        // Predicated region
        $region17: #{tpu_custom_call.1} parent=11 // pred_check
          %p305 = pneg %p206
        $region18: #{tpu_custom_call.1} parent=11 // pred_check_branch
          %307 = sbr.rel (%p305) target = $region20
        $region19: #{tpu_custom_call.1} parent=11 // pred_region
          _
        $region20: #{tpu_custom_call.1} parent=11 // pred_fallthru
          _
        // Predicated region
        $region21: #{tpu_custom_call.1} parent=11 // pred_check
          %p308 = pneg %p227
        $region22: #{tpu_custom_call.1} parent=11 // pred_check_branch
          %310 = sbr.rel (%p308) target = $region24
        $region23: #{tpu_custom_call.1} parent=11 // pred_region
          _
        $region24: #{tpu_custom_call.1} parent=11 // pred_fallthru
          _
        // Predicated region
        $region25: #{tpu_custom_call.1} parent=11 // pred_check
          %p311 = pneg %p248
        $region26: #{tpu_custom_call.1} parent=11 // pred_check_branch
          %313 = sbr.rel (%p311) target = $region28
        $region27: #{tpu_custom_call.1} parent=11 // pred_region
          _
        $region28: #{tpu_custom_call.1} parent=11 // pred_fallthru
          _
      $region12: #{tpu_custom_call.1} parent=5 // pred_fallthru
        _
      %p314 = scmp.lt.s32.totalorder %s24, 4
      // Predicated region
      $region29: #{tpu_custom_call.1} parent=5 // pred_check
        %p315 = pneg %p314
      $region30: #{tpu_custom_call.1} parent=5 // pred_check_branch
        %317 = sbr.rel (%p315) target = $region32
      $region31: #{tpu_custom_call.1} parent=5 // pred_region
        // Predicated region
        $region33: #{tpu_custom_call.1} parent=31 // pred_check
          %p318 = pneg %p58
        $region34: #{tpu_custom_call.1} parent=31 // pred_check_branch
          %320 = sbr.rel (%p318) target = $region36
        $region35: #{tpu_custom_call.1} parent=31 // pred_region
          %s321 = sand.u32 %s48, 1
          %s322 = scalar_lea.sflag [#allocation3], %s321
          %s323 = sand.u32 %s48, 1
          %s324 = smul.addr %s323, 32
          %s325 = scalar_lea.vmem [#allocation2], %s324
          %s326 = smul.u32 2, %s32
          %328 = vsyncadd %s322, 0
          %s329 = smul.addr %s31, 8
          %s330 = sadd.s32 %s326, %s329
          %s331 = smul.addr %s330, 8
          %s332 = scalar_lea.hbm %s0, %s331
          %s333 = sshll.u32 %s332, 4
          %s334 = int_to_ptr.hbm [resolvable:$true] %s333
          %s335 = sshll.u32 %s325, 4
          %s336 = int_to_ptr.vmem [resolvable:$true] %s335
          %341 = dma.hbm_to_vmem [thread:$0]  %s334, 512, %s336, %s322, 512, 256, 16
        $region36: #{tpu_custom_call.1} parent=31 // pred_fallthru
          _
        // Predicated region
        $region37: #{tpu_custom_call.1} parent=31 // pred_check
          %p342 = pneg %p94
        $region38: #{tpu_custom_call.1} parent=31 // pred_check_branch
          %344 = sbr.rel (%p342) target = $region40
        $region39: #{tpu_custom_call.1} parent=31 // pred_region
          %s345 = sand.u32 %s24, 1
          %s346 = scalar_lea.sflag [#allocation6], %s345
          %s347 = sand.u32 %s84, 1
          %s348 = smul.addr %s347, 16
          %s349 = scalar_lea.vmem [#allocation5], %s348
          %s350 = smul.u32 %s32, 2
          %s351 = ssub.s32 %s350, 1
          %p352 = scmp.gt.s32.totalorder %s351, 0
          %s353 = scalar_select %p352, %s351, 0
          %355 = vsyncadd %s346, 0
          %s356 = smul.addr %s31, 8
          %s357 = sadd.s32 %s353, %s356
          %s358 = smul.addr %s357, 8
          %s359 = scalar_lea.hbm %s1, %s358
          %s360 = sshll.u32 %s359, 4
          %s361 = int_to_ptr.hbm [resolvable:$true] %s360
          %s362 = sshll.u32 %s349, 4
          %s363 = int_to_ptr.vmem [resolvable:$true] %s362
          %368 = dma.hbm_to_vmem [thread:$0]  %s361, 256, %s363, %s346, 512, 128, 8
        $region40: #{tpu_custom_call.1} parent=31 // pred_fallthru
          _
        // Predicated region
        $region41: #{tpu_custom_call.1} parent=31 // pred_check
          %p369 = pneg %p130
        $region42: #{tpu_custom_call.1} parent=31 // pred_check_branch
          %371 = sbr.rel (%p369) target = $region44
        $region43: #{tpu_custom_call.1} parent=31 // pred_region
          %s372 = sand.u32 %s24, 1
          %s373 = scalar_lea.sflag [#allocation6], %s372
          %s374 = sand.u32 %s120, 1
          %s375 = smul.addr %s374, 16
          %s376 = scalar_lea.vmem [#allocation7], %s375
          %s377 = sadd.s32 %s32, 1
          %s378 = smul.u32 %s377, 2
          %p379 = scmp.lt.s32.totalorder %s378, 3
          %s380 = scalar_select %p379, %s378, 3
          %382 = vsyncadd %s373, 0
          %s383 = smul.addr %s31, 8
          %s384 = sadd.s32 %s380, %s383
          %s385 = smul.addr %s384, 8
          %s386 = scalar_lea.hbm %s2, %s385
          %s387 = sshll.u32 %s386, 4
          %s388 = int_to_ptr.hbm [resolvable:$true] %s387
          %s389 = sshll.u32 %s376, 4
          %s390 = int_to_ptr.vmem [resolvable:$true] %s389
          %395 = dma.hbm_to_vmem [thread:$0]  %s388, 256, %s390, %s373, 512, 128, 8
        $region44: #{tpu_custom_call.1} parent=31 // pred_fallthru
          _
        // Predicated region
        $region45: #{tpu_custom_call.1} parent=31 // pred_check
          %p396 = pneg %p158
        $region46: #{tpu_custom_call.1} parent=31 // pred_check_branch
          %398 = sbr.rel (%p396) target = $region48
        $region47: #{tpu_custom_call.1} parent=31 // pred_region
          %s399 = smul.u32 2, %s32
          %p400 = scmp.lt.s32.totalorder %s31, 1
          %s401 = scalar_select %p400, %s31, 1
          %p402 = scmp.lt.s32.totalorder %s399, 3
          %s403 = scalar_select %p402, %s399, 3
          %s404 = smul.addr %s401, 4
          %s405 = sadd.s32 %s403, %s404
          %s406 = scalar_lea.vmem %s3, %s405
          %s407 = smul.u32 2, %s32
        $region48: #{tpu_custom_call.1} parent=31 // pred_fallthru
          _
      $region32: #{tpu_custom_call.1} parent=5 // pred_fallthru
        _
      %p408 = scmp.le.s32.totalorder 1, %s24
      %p409 = scmp.lt.s32.totalorder %s24, 5
      %p410 = pnand %p408, %p409
      %p411 = pneg %p410
      // Predicated region
      $region49: #{tpu_custom_call.1} parent=5 // pred_check
        _
      $region50: #{tpu_custom_call.1} parent=5 // pred_check_branch
        %413 = sbr.rel (%p410) target = $region52
      $region51: #{tpu_custom_call.1} parent=5 // pred_region
        %s414 = ssub.s32 %s24, 1
        %s415 = sand.u32 %s51, 1
        %s416 = scalar_lea.sflag [#allocation3], %s415
        %s417 = sand.u32 %s51, 1
        %s418 = smul.addr %s417, 32
        %s419 = scalar_lea.vmem [#allocation2], %s418
        // Predicated region
        $region53: #{tpu_custom_call.1} parent=51 // pred_check
          %p420 = pneg %p64
        $region54: #{tpu_custom_call.1} parent=51 // pred_check_branch
          %422 = sbr.rel (%p420) target = $region56
        $region55: #{tpu_custom_call.1} parent=51 // pred_region
          %424 = dma.done %s416, 512
        $region56: #{tpu_custom_call.1} parent=51 // pred_fallthru
          _
        %s425 = sand.u32 %s29, 1
        %s426 = scalar_lea.sflag [#allocation6], %s425
        %s427 = sand.u32 %s87, 1
        %s428 = smul.addr %s427, 16
        %s429 = scalar_lea.vmem [#allocation5], %s428
        // Predicated region
        $region57: #{tpu_custom_call.1} parent=51 // pred_check
          %p430 = pneg %p100
        $region58: #{tpu_custom_call.1} parent=51 // pred_check_branch
          %432 = sbr.rel (%p430) target = $region60
        $region59: #{tpu_custom_call.1} parent=51 // pred_region
          %434 = dma.done %s426, 256
        $region60: #{tpu_custom_call.1} parent=51 // pred_fallthru
          _
        %s435 = sand.u32 %s29, 1
        %s436 = scalar_lea.sflag [#allocation6], %s435
        %s437 = sand.u32 %s123, 1
        %s438 = smul.addr %s437, 16
        %s439 = scalar_lea.vmem [#allocation7], %s438
        // Predicated region
        $region61: #{tpu_custom_call.1} parent=51 // pred_check
          %p440 = pneg %p136
        $region62: #{tpu_custom_call.1} parent=51 // pred_check_branch
          %442 = sbr.rel (%p440) target = $region64
        $region63: #{tpu_custom_call.1} parent=51 // pred_region
          %444 = dma.done %s436, 256
        $region64: #{tpu_custom_call.1} parent=51 // pred_fallthru
          _
        // Predicated region
        $region65: #{tpu_custom_call.1} parent=51 // pred_check
          %p445 = pneg %p185
        $region66: #{tpu_custom_call.1} parent=51 // pred_check_branch
          %447 = sbr.rel (%p445) target = $region68
        $region67: #{tpu_custom_call.1} parent=51 // pred_region
          %449 = dma.done [#allocation9], 768
        $region68: #{tpu_custom_call.1} parent=51 // pred_fallthru
          _
        %s450 = sand.u32 %s51, 1
        %s451 = scalar_lea.sflag [#allocation3], %s450
        %s452 = sand.u32 %s51, 1
        %s453 = smul.addr %s452, 32
        %s454 = scalar_lea.vmem [#allocation2], %s453
        %p455 = pneg %p64
        %p456 = pneg %p61
        %s457 = sand.u32 %s29, 1
        %s458 = scalar_lea.sflag [#allocation6], %s457
        %s459 = sand.u32 %s87, 1
        %s460 = smul.addr %s459, 16
        %s461 = scalar_lea.vmem [#allocation5], %s460
        %p462 = pneg %p100
        %p463 = pneg %p97
        %s464 = sand.u32 %s29, 1
        %s465 = scalar_lea.sflag [#allocation6], %s464
        %s466 = sand.u32 %s123, 1
        %s467 = smul.addr %s466, 16
        %s468 = scalar_lea.vmem [#allocation7], %s467
        %p469 = pneg %p136
        %p470 = pneg %p133
        %s471 = smul.u32 2, %s34
        %p472 = scmp.lt.s32.totalorder %s33, 1
        %s473 = scalar_select %p472, %s33, 1
        %p474 = scmp.lt.s32.totalorder %s471, 3
        %s475 = scalar_select %p474, %s471, 3
        %s476 = smul.addr %s473, 4
        %s477 = sadd.s32 %s475, %s476
        %s478 = scalar_lea.vmem %s3, %s477
        %p479 = pneg %p164
        %p480 = pneg %p161
        %p481 = pneg %p185
        %p482 = pneg %p182
        %p483 = pneg %p206
        %p484 = pneg %p203
        %p485 = pneg %p227
        %p486 = pneg %p224
        %p487 = pneg %p248
        %p488 = pneg %p245
        %p489 = pneg %p276
        %p490 = pneg %p273
        %s491 = sand.u32 %s263, 1
        %s492 = scalar_lea.sflag [#allocation4], %s491
        %s493 = sand.u32 %s263, 1
        %s494 = smul.addr %s493, 32
        %s495 = scalar_lea.vmem [#allocation10], %s494
        %s496 = smul.u32 2, %s34
        %s497 = smul.u32 %s34, 2
        %s498 = ssub.s32 %s497, 1
        %p499 = scmp.gt.s32.totalorder %s498, 0
        %s500 = scalar_select %p499, %s498, 0
        %s501 = sadd.s32 %s34, 1
        %s502 = smul.u32 %s501, 2
        %p503 = scmp.lt.s32.totalorder %s502, 3
        %s504 = scalar_select %p503, %s502, 3
        %s505 = smul.u32 2, %s34
        %p506 = scmp.lt.s32.totalorder %s33, 1
        %s507 = scalar_select %p506, %s33, 1
        %p508 = scmp.lt.s32.totalorder %s505, 3
        %s509 = scalar_select %p508, %s505, 3
        %s510 = smul.addr %s507, 4
        %s511 = sadd.s32 %s509, %s510
        %s512 = scalar_lea.vmem %s3, %s511
        %s513 = smul.u32 2, %s34
        %s514 = smul.u32 2, %s34
        %p515 = scmp.gt.s32.totalorder %s34, 0
        %s516 = scalar_select %p515, 1, 0
        %s517 = scvt.s32.f32 %s516
        %p518 = scmp.lt.s32.totalorder %s34, 1
        %s519 = scalar_select %p518, 1, 0
        %s520 = scvt.s32.f32 %s519
        %v521 = vld [vmem:[%s429] sm:$0xff]
        %v522 = vld [vmem:[%s429 + $0x8] sm:$0xff]
        %v523 = vstv %s517
        %v524 = vmul.f32 %v521, %v523
        %v525 = vmul.f32 %v522, %v523
        %v526 = vld [vmem:[%s439] sm:$0xff]
        %v527 = vld [vmem:[%s439 + $0x8] sm:$0xff]
        %v528 = vstv %s520
        %v529 = vmul.f32 %v526, %v528
        %v530 = vmul.f32 %v527, %v528
        %v531 = vld [vmem:[%s419] sm:$0xff]
        %v532 = vld [vmem:[%s419 + $0x8] sm:$0xff]
        %v533 = vld [vmem:[%s419 + $0x10] sm:$0xff]
        %v534 = vld [vmem:[%s419 + $0x18] sm:$0xff]
        %v535 = vld [vmem:[%s512] sm:$0x3]
        %v536 = vld [vmem:[#allocation8] sm:$0xff]
        %v537 = vld [vmem:[#allocation8 + $0x8] sm:$0xff]
        %s538 = scalar_lea.vmem [#allocation8], 16
        %v539 = vld [vmem:[%s538] sm:$0xff]
        %v540 = vld [vmem:[%s538 + $0x8] sm:$0xff]
        %vm541 = vcmask 130048
        %v543 = vsel %vm541, %v539, 0
        %v546 = vsel %vm541, %v540, 0
        %548 = vmatpush.msra.mxu0 0.0
        %549 = vmatpush.msra.mxu0 0.0
        %550 = vmatpush.msra.mxu0 0.0
        %551 = vmatpush.msra.mxu0 0.0
        %552 = vmatpush.msra.mxu0 0.0
        %553 = vmatpush.msra.mxu0 0.0
        %554 = vmatpush.msra.mxu0 0.0
        %555 = vmatpush.msra.mxu0 0.0
        %556 = vmatpush.msra.mxu0 0.0
        %557 = vmatpush.msra.mxu0 0.0
        %558 = vmatpush.msra.mxu0 0.0
        %559 = vmatpush.msra.mxu0 0.0
        %560 = vmatpush.msra.mxu0 0.0
        %561 = vmatpush.msra.mxu0 0.0
        %v562 = vand.u32 %v533, 4294901760
        %563 = vmatpush.msra.mxu0 %v562
        %v564 = vand.u32 %v531, 4294901760
        %565 = vmatpush.msra.mxu0 %v564
        %v566 = vand.u32 %v543, 4294901760
        %v567 = vsub.f32 %v543, %v566
        %v568 = vand.u32 %v567, 4294901760
        %v569 = vsub.f32 %v567, %v568
        %v570 = vand.u32 %v569, 4294901760
        %571 = vmatmul.f32.gmra.mxu0 %v570
        %v572 = vpop.f32.mrf.mxu0
        %v573 = vadd.f32 0.0, %v572
        %v574 = vand.u32 %v546, 4294901760
        %v575 = vsub.f32 %v546, %v574
        %v576 = vand.u32 %v575, 4294901760
        %v577 = vsub.f32 %v575, %v576
        %v578 = vand.u32 %v577, 4294901760
        %579 = vmatmul.f32.gmra.mxu0 %v578
        %v580 = vpop.f32.mrf.mxu0
        %v581 = vadd.f32 0.0, %v580
        %582 = vdwg.mxu0
        %583 = vmatpush.msra.mxu0 0.0
        %584 = vmatpush.msra.mxu0 0.0
        %585 = vmatpush.msra.mxu0 0.0
        %586 = vmatpush.msra.mxu0 0.0
        %587 = vmatpush.msra.mxu0 0.0
        %588 = vmatpush.msra.mxu0 0.0
        %589 = vmatpush.msra.mxu0 0.0
        %590 = vmatpush.msra.mxu0 0.0
        %591 = vmatpush.msra.mxu0 0.0
        %592 = vmatpush.msra.mxu0 0.0
        %593 = vmatpush.msra.mxu0 0.0
        %594 = vmatpush.msra.mxu0 0.0
        %595 = vmatpush.msra.mxu0 0.0
        %596 = vmatpush.msra.mxu0 0.0
        %v597 = vand.u32 %v533, 4294901760
        %v598 = vsub.f32 %v533, %v597
        %v599 = vand.u32 %v598, 4294901760
        %v600 = vsub.f32 %v598, %v599
        %v601 = vand.u32 %v600, 4294901760
        %602 = vmatpush.msra.mxu0 %v601
        %v603 = vand.u32 %v531, 4294901760
        %v604 = vsub.f32 %v531, %v603
        %v605 = vand.u32 %v604, 4294901760
        %v606 = vsub.f32 %v604, %v605
        %v607 = vand.u32 %v606, 4294901760
        %608 = vmatpush.msra.mxu0 %v607
        %v609 = vand.u32 %v543, 4294901760
        %610 = vmatmul.f32.gmra.mxu0 %v609
        %v611 = vpop.f32.mrf.mxu0
        %v612 = vadd.f32 %v573, %v611
        %v613 = vand.u32 %v546, 4294901760
        %614 = vmatmul.f32.gmra.mxu0 %v613
        %v615 = vpop.f32.mrf.mxu0
        %v616 = vadd.f32 %v581, %v615
        %617 = vdwg.mxu0
        %618 = vmatpush.msra.mxu0 0.0
        %619 = vmatpush.msra.mxu0 0.0
        %620 = vmatpush.msra.mxu0 0.0
        %621 = vmatpush.msra.mxu0 0.0
        %622 = vmatpush.msra.mxu0 0.0
        %623 = vmatpush.msra.mxu0 0.0
        %624 = vmatpush.msra.mxu0 0.0
        %625 = vmatpush.msra.mxu0 0.0
        %626 = vmatpush.msra.mxu0 0.0
        %627 = vmatpush.msra.mxu0 0.0
        %628 = vmatpush.msra.mxu0 0.0
        %629 = vmatpush.msra.mxu0 0.0
        %630 = vmatpush.msra.mxu0 0.0
        %631 = vmatpush.msra.mxu0 0.0
        %v632 = vand.u32 %v533, 4294901760
        %v633 = vsub.f32 %v533, %v632
        %634 = vmatpush.msra.mxu0 %v633
        %v635 = vand.u32 %v531, 4294901760
        %v636 = vsub.f32 %v531, %v635
        %637 = vmatpush.msra.mxu0 %v636
        %v638 = vand.u32 %v543, 4294901760
        %v639 = vsub.f32 %v543, %v638
        %640 = vmatmul.f32.gmra.mxu0 %v639
        %v641 = vpop.f32.mrf.mxu0
        %v642 = vadd.f32 %v612, %v641
        %v643 = vand.u32 %v546, 4294901760
        %v644 = vsub.f32 %v546, %v643
        %645 = vmatmul.f32.gmra.mxu0 %v644
        %v646 = vpop.f32.mrf.mxu0
        %v647 = vadd.f32 %v616, %v646
        %648 = vdwg.mxu0
        %649 = vmatpush.msra.mxu0 0.0
        %650 = vmatpush.msra.mxu0 0.0
        %651 = vmatpush.msra.mxu0 0.0
        %652 = vmatpush.msra.mxu0 0.0
        %653 = vmatpush.msra.mxu0 0.0
        %654 = vmatpush.msra.mxu0 0.0
        %655 = vmatpush.msra.mxu0 0.0
        %656 = vmatpush.msra.mxu0 0.0
        %657 = vmatpush.msra.mxu0 0.0
        %658 = vmatpush.msra.mxu0 0.0
        %659 = vmatpush.msra.mxu0 0.0
        %660 = vmatpush.msra.mxu0 0.0
        %661 = vmatpush.msra.mxu0 0.0
        %662 = vmatpush.msra.mxu0 0.0
        %v663 = vand.u32 %v533, 4294901760
        %664 = vmatpush.msra.mxu0 %v663
        %v665 = vand.u32 %v531, 4294901760
        %666 = vmatpush.msra.mxu0 %v665
        %v667 = vand.u32 %v543, 4294901760
        %v668 = vsub.f32 %v543, %v667
        %v669 = vand.u32 %v668, 4294901760
        %670 = vmatmul.f32.gmra.mxu0 %v669
        %v671 = vpop.f32.mrf.mxu0
        %v672 = vadd.f32 %v642, %v671
        %v673 = vand.u32 %v546, 4294901760
        %v674 = vsub.f32 %v546, %v673
        %v675 = vand.u32 %v674, 4294901760
        %676 = vmatmul.f32.gmra.mxu0 %v675
        %v677 = vpop.f32.mrf.mxu0
        %v678 = vadd.f32 %v647, %v677
        %679 = vdwg.mxu0
        %680 = vmatpush.msra.mxu0 0.0
        %681 = vmatpush.msra.mxu0 0.0
        %682 = vmatpush.msra.mxu0 0.0
        %683 = vmatpush.msra.mxu0 0.0
        %684 = vmatpush.msra.mxu0 0.0
        %685 = vmatpush.msra.mxu0 0.0
        %686 = vmatpush.msra.mxu0 0.0
        %687 = vmatpush.msra.mxu0 0.0
        %688 = vmatpush.msra.mxu0 0.0
        %689 = vmatpush.msra.mxu0 0.0
        %690 = vmatpush.msra.mxu0 0.0
        %691 = vmatpush.msra.mxu0 0.0
        %692 = vmatpush.msra.mxu0 0.0
        %693 = vmatpush.msra.mxu0 0.0
        %v694 = vand.u32 %v533, 4294901760
        %v695 = vsub.f32 %v533, %v694
        %v696 = vand.u32 %v695, 4294901760
        %697 = vmatpush.msra.mxu0 %v696
        %v698 = vand.u32 %v531, 4294901760
        %v699 = vsub.f32 %v531, %v698
        %v700 = vand.u32 %v699, 4294901760
        %701 = vmatpush.msra.mxu0 %v700
        %v702 = vand.u32 %v543, 4294901760
        %703 = vmatmul.f32.gmra.mxu0 %v702
        %v704 = vpop.f32.mrf.mxu0
        %v705 = vadd.f32 %v672, %v704
        %v706 = vand.u32 %v546, 4294901760
        %707 = vmatmul.f32.gmra.mxu0 %v706
        %v708 = vpop.f32.mrf.mxu0
        %v709 = vadd.f32 %v678, %v708
        %710 = vdwg.mxu0
        %711 = vmatpush.msra.mxu0 0.0
        %712 = vmatpush.msra.mxu0 0.0
        %713 = vmatpush.msra.mxu0 0.0
        %714 = vmatpush.msra.mxu0 0.0
        %715 = vmatpush.msra.mxu0 0.0
        %716 = vmatpush.msra.mxu0 0.0
        %717 = vmatpush.msra.mxu0 0.0
        %718 = vmatpush.msra.mxu0 0.0
        %719 = vmatpush.msra.mxu0 0.0
        %720 = vmatpush.msra.mxu0 0.0
        %721 = vmatpush.msra.mxu0 0.0
        %722 = vmatpush.msra.mxu0 0.0
        %723 = vmatpush.msra.mxu0 0.0
        %724 = vmatpush.msra.mxu0 0.0
        %v725 = vand.u32 %v533, 4294901760
        %726 = vmatpush.msra.mxu0 %v725
        %v727 = vand.u32 %v531, 4294901760
        %728 = vmatpush.msra.mxu0 %v727
        %v729 = vand.u32 %v543, 4294901760
        %730 = vmatmul.f32.gmra.mxu0 %v729
        %v731 = vpop.f32.mrf.mxu0
        %v732 = vadd.f32 %v705, %v731
        %v733 = vand.u32 %v546, 4294901760
        %734 = vmatmul.f32.gmra.mxu0 %v733
        %v735 = vpop.f32.mrf.mxu0
        %v736 = vadd.f32 %v709, %v735
        %737 = vdwg.mxu0
        %738 = vmatpush.msra.mxu0 0.0
        %739 = vmatpush.msra.mxu0 0.0
        %740 = vmatpush.msra.mxu0 0.0
        %741 = vmatpush.msra.mxu0 0.0
        %742 = vmatpush.msra.mxu0 0.0
        %743 = vmatpush.msra.mxu0 0.0
        %744 = vmatpush.msra.mxu0 0.0
        %745 = vmatpush.msra.mxu0 0.0
        %746 = vmatpush.msra.mxu0 0.0
        %747 = vmatpush.msra.mxu0 0.0
        %748 = vmatpush.msra.mxu0 0.0
        %749 = vmatpush.msra.mxu0 0.0
        %750 = vmatpush.msra.mxu0 0.0
        %751 = vmatpush.msra.mxu0 0.0
        %v752 = vand.u32 %v534, 4294901760
        %753 = vmatpush.msra.mxu0 %v752
        %v754 = vand.u32 %v532, 4294901760
        %755 = vmatpush.msra.mxu0 %v754
        %v756 = vand.u32 %v543, 4294901760
        %v757 = vsub.f32 %v543, %v756
        %v758 = vand.u32 %v757, 4294901760
        %v759 = vsub.f32 %v757, %v758
        %v760 = vand.u32 %v759, 4294901760
        %761 = vmatmul.f32.gmra.mxu0 %v760
        %v762 = vpop.f32.mrf.mxu0
        %v763 = vadd.f32 0.0, %v762
        %v764 = vand.u32 %v546, 4294901760
        %v765 = vsub.f32 %v546, %v764
        %v766 = vand.u32 %v765, 4294901760
        %v767 = vsub.f32 %v765, %v766
        %v768 = vand.u32 %v767, 4294901760
        %769 = vmatmul.f32.gmra.mxu0 %v768
        %v770 = vpop.f32.mrf.mxu0
        %v771 = vadd.f32 0.0, %v770
        %772 = vdwg.mxu0
        %773 = vmatpush.msra.mxu0 0.0
        %774 = vmatpush.msra.mxu0 0.0
        %775 = vmatpush.msra.mxu0 0.0
        %776 = vmatpush.msra.mxu0 0.0
        %777 = vmatpush.msra.mxu0 0.0
        %778 = vmatpush.msra.mxu0 0.0
        %779 = vmatpush.msra.mxu0 0.0
        %780 = vmatpush.msra.mxu0 0.0
        %781 = vmatpush.msra.mxu0 0.0
        %782 = vmatpush.msra.mxu0 0.0
        %783 = vmatpush.msra.mxu0 0.0
        %784 = vmatpush.msra.mxu0 0.0
        %785 = vmatpush.msra.mxu0 0.0
        %786 = vmatpush.msra.mxu0 0.0
        %v787 = vand.u32 %v534, 4294901760
        %v788 = vsub.f32 %v534, %v787
        %v789 = vand.u32 %v788, 4294901760
        %v790 = vsub.f32 %v788, %v789
        %v791 = vand.u32 %v790, 4294901760
        %792 = vmatpush.msra.mxu0 %v791
        %v793 = vand.u32 %v532, 4294901760
        %v794 = vsub.f32 %v532, %v793
        %v795 = vand.u32 %v794, 4294901760
        %v796 = vsub.f32 %v794, %v795
        %v797 = vand.u32 %v796, 4294901760
        %798 = vmatpush.msra.mxu0 %v797
        %v799 = vand.u32 %v543, 4294901760
        %800 = vmatmul.f32.gmra.mxu0 %v799
        %v801 = vpop.f32.mrf.mxu0
        %v802 = vadd.f32 %v763, %v801
        %v803 = vand.u32 %v546, 4294901760
        %804 = vmatmul.f32.gmra.mxu0 %v803
        %v805 = vpop.f32.mrf.mxu0
        %v806 = vadd.f32 %v771, %v805
        %807 = vdwg.mxu0
        %808 = vmatpush.msra.mxu0 0.0
        %809 = vmatpush.msra.mxu0 0.0
        %810 = vmatpush.msra.mxu0 0.0
        %811 = vmatpush.msra.mxu0 0.0
        %812 = vmatpush.msra.mxu0 0.0
        %813 = vmatpush.msra.mxu0 0.0
        %814 = vmatpush.msra.mxu0 0.0
        %815 = vmatpush.msra.mxu0 0.0
        %816 = vmatpush.msra.mxu0 0.0
        %817 = vmatpush.msra.mxu0 0.0
        %818 = vmatpush.msra.mxu0 0.0
        %819 = vmatpush.msra.mxu0 0.0
        %820 = vmatpush.msra.mxu0 0.0
        %821 = vmatpush.msra.mxu0 0.0
        %v822 = vand.u32 %v534, 4294901760
        %v823 = vsub.f32 %v534, %v822
        %824 = vmatpush.msra.mxu0 %v823
        %v825 = vand.u32 %v532, 4294901760
        %v826 = vsub.f32 %v532, %v825
        %827 = vmatpush.msra.mxu0 %v826
        %v828 = vand.u32 %v543, 4294901760
        %v829 = vsub.f32 %v543, %v828
        %830 = vmatmul.f32.gmra.mxu0 %v829
        %v831 = vpop.f32.mrf.mxu0
        %v832 = vadd.f32 %v802, %v831
        %v833 = vand.u32 %v546, 4294901760
        %v834 = vsub.f32 %v546, %v833
        %835 = vmatmul.f32.gmra.mxu0 %v834
        %v836 = vpop.f32.mrf.mxu0
        %v837 = vadd.f32 %v806, %v836
        %838 = vdwg.mxu0
        %839 = vmatpush.msra.mxu0 0.0
        %840 = vmatpush.msra.mxu0 0.0
        %841 = vmatpush.msra.mxu0 0.0
        %842 = vmatpush.msra.mxu0 0.0
        %843 = vmatpush.msra.mxu0 0.0
        %844 = vmatpush.msra.mxu0 0.0
        %845 = vmatpush.msra.mxu0 0.0
        %846 = vmatpush.msra.mxu0 0.0
        %847 = vmatpush.msra.mxu0 0.0
        %848 = vmatpush.msra.mxu0 0.0
        %849 = vmatpush.msra.mxu0 0.0
        %850 = vmatpush.msra.mxu0 0.0
        %851 = vmatpush.msra.mxu0 0.0
        %852 = vmatpush.msra.mxu0 0.0
        %v853 = vand.u32 %v534, 4294901760
        %854 = vmatpush.msra.mxu0 %v853
        %v855 = vand.u32 %v532, 4294901760
        %856 = vmatpush.msra.mxu0 %v855
        %v857 = vand.u32 %v543, 4294901760
        %v858 = vsub.f32 %v543, %v857
        %v859 = vand.u32 %v858, 4294901760
        %860 = vmatmul.f32.gmra.mxu0 %v859
        %v861 = vpop.f32.mrf.mxu0
        %v862 = vadd.f32 %v832, %v861
        %v863 = vand.u32 %v546, 4294901760
        %v864 = vsub.f32 %v546, %v863
        %v865 = vand.u32 %v864, 4294901760
        %866 = vmatmul.f32.gmra.mxu0 %v865
        %v867 = vpop.f32.mrf.mxu0
        %v868 = vadd.f32 %v837, %v867
        %869 = vdwg.mxu0
        %870 = vmatpush.msra.mxu0 0.0
        %871 = vmatpush.msra.mxu0 0.0
        %872 = vmatpush.msra.mxu0 0.0
        %873 = vmatpush.msra.mxu0 0.0
        %874 = vmatpush.msra.mxu0 0.0
        %875 = vmatpush.msra.mxu0 0.0
        %876 = vmatpush.msra.mxu0 0.0
        %877 = vmatpush.msra.mxu0 0.0
        %878 = vmatpush.msra.mxu0 0.0
        %879 = vmatpush.msra.mxu0 0.0
        %880 = vmatpush.msra.mxu0 0.0
        %881 = vmatpush.msra.mxu0 0.0
        %882 = vmatpush.msra.mxu0 0.0
        %883 = vmatpush.msra.mxu0 0.0
        %v884 = vand.u32 %v534, 4294901760
        %v885 = vsub.f32 %v534, %v884
        %v886 = vand.u32 %v885, 4294901760
        %887 = vmatpush.msra.mxu0 %v886
        %v888 = vand.u32 %v532, 4294901760
        %v889 = vsub.f32 %v532, %v888
        %v890 = vand.u32 %v889, 4294901760
        %891 = vmatpush.msra.mxu0 %v890
        %v892 = vand.u32 %v543, 4294901760
        %893 = vmatmul.f32.gmra.mxu0 %v892
        %v894 = vpop.f32.mrf.mxu0
        %v895 = vadd.f32 %v862, %v894
        %v896 = vand.u32 %v546, 4294901760
        %897 = vmatmul.f32.gmra.mxu0 %v896
        %v898 = vpop.f32.mrf.mxu0
        %v899 = vadd.f32 %v868, %v898
        %900 = vdwg.mxu0
        %901 = vmatpush.msra.mxu0 0.0
        %902 = vmatpush.msra.mxu0 0.0
        %903 = vmatpush.msra.mxu0 0.0
        %904 = vmatpush.msra.mxu0 0.0
        %905 = vmatpush.msra.mxu0 0.0
        %906 = vmatpush.msra.mxu0 0.0
        %907 = vmatpush.msra.mxu0 0.0
        %908 = vmatpush.msra.mxu0 0.0
        %909 = vmatpush.msra.mxu0 0.0
        %910 = vmatpush.msra.mxu0 0.0
        %911 = vmatpush.msra.mxu0 0.0
        %912 = vmatpush.msra.mxu0 0.0
        %913 = vmatpush.msra.mxu0 0.0
        %914 = vmatpush.msra.mxu0 0.0
        %v915 = vand.u32 %v534, 4294901760
        %916 = vmatpush.msra.mxu0 %v915
        %v917 = vand.u32 %v532, 4294901760
        %918 = vmatpush.msra.mxu0 %v917
        %v919 = vand.u32 %v543, 4294901760
        %920 = vmatmul.f32.gmra.mxu0 %v919
        %v921 = vpop.f32.mrf.mxu0
        %v922 = vadd.f32 %v895, %v921
        %v923 = vand.u32 %v546, 4294901760
        %924 = vmatmul.f32.gmra.mxu0 %v923
        %v925 = vpop.f32.mrf.mxu0
        %v926 = vadd.f32 %v899, %v925
        %927 = vdwg.mxu0
        %934 = vrot.lane.b32.xlu0 %v524, 2
        %v935 = vpop.permute.xlu0 %934
        %936 = vrot.lane.b32.xlu0 %v531, 2
        %v937 = vpop.permute.xlu0 %936
        %938 = vrot.lane.b32.xlu0 %v532, 2
        %v939 = vpop.permute.xlu0 %938
        %940 = vrot.lane.b32.xlu0 %v525, 2
        %v941 = vpop.permute.xlu0 %940
        %942 = vrot.lane.b32.xlu0 %v533, 2
        %v943 = vpop.permute.xlu0 %942
        %944 = vrot.lane.b32.xlu0 %v534, 2
        %v945 = vpop.permute.xlu0 %944
        %vm946 = vcmask 15360
        %v947 = vsel %vm946, %v935, %v937
        %v948 = vsel %vm946, %v937, %v939
        %v949 = vsel %vm946, %v941, %v943
        %v950 = vsel %vm946, %v943, %v945
        %v956 = vsel %vm541, %v536, 0
        %v959 = vsel %vm541, %v537, 0
        %961 = vmatpush.msra.mxu0 0.0
        %962 = vmatpush.msra.mxu0 0.0
        %963 = vmatpush.msra.mxu0 0.0
        %964 = vmatpush.msra.mxu0 0.0
        %965 = vmatpush.msra.mxu0 0.0
        %966 = vmatpush.msra.mxu0 0.0
        %967 = vmatpush.msra.mxu0 0.0
        %968 = vmatpush.msra.mxu0 0.0
        %969 = vmatpush.msra.mxu0 0.0
        %970 = vmatpush.msra.mxu0 0.0
        %971 = vmatpush.msra.mxu0 0.0
        %972 = vmatpush.msra.mxu0 0.0
        %973 = vmatpush.msra.mxu0 0.0
        %974 = vmatpush.msra.mxu0 0.0
        %v975 = vand.u32 %v949, 4294901760
        %976 = vmatpush.msra.mxu0 %v975
        %v977 = vand.u32 %v947, 4294901760
        %978 = vmatpush.msra.mxu0 %v977
        %v979 = vand.u32 %v956, 4294901760
        %v980 = vsub.f32 %v956, %v979
        %v981 = vand.u32 %v980, 4294901760
        %v982 = vsub.f32 %v980, %v981
        %v983 = vand.u32 %v982, 4294901760
        %984 = vmatmul.f32.gmra.mxu0 %v983
        %v985 = vpop.f32.mrf.mxu0
        %v986 = vadd.f32 %v732, %v985
        %v987 = vand.u32 %v959, 4294901760
        %v988 = vsub.f32 %v959, %v987
        %v989 = vand.u32 %v988, 4294901760
        %v990 = vsub.f32 %v988, %v989
        %v991 = vand.u32 %v990, 4294901760
        %992 = vmatmul.f32.gmra.mxu0 %v991
        %v993 = vpop.f32.mrf.mxu0
        %v994 = vadd.f32 %v736, %v993
        %995 = vdwg.mxu0
        %996 = vmatpush.msra.mxu0 0.0
        %997 = vmatpush.msra.mxu0 0.0
        %998 = vmatpush.msra.mxu0 0.0
        %999 = vmatpush.msra.mxu0 0.0
        %1000 = vmatpush.msra.mxu0 0.0
        %1001 = vmatpush.msra.mxu0 0.0
        %1002 = vmatpush.msra.mxu0 0.0
        %1003 = vmatpush.msra.mxu0 0.0
        %1004 = vmatpush.msra.mxu0 0.0
        %1005 = vmatpush.msra.mxu0 0.0
        %1006 = vmatpush.msra.mxu0 0.0
        %1007 = vmatpush.msra.mxu0 0.0
        %1008 = vmatpush.msra.mxu0 0.0
        %1009 = vmatpush.msra.mxu0 0.0
        %v1010 = vand.u32 %v949, 4294901760
        %v1011 = vsub.f32 %v949, %v1010
        %v1012 = vand.u32 %v1011, 4294901760
        %v1013 = vsub.f32 %v1011, %v1012
        %v1014 = vand.u32 %v1013, 4294901760
        %1015 = vmatpush.msra.mxu0 %v1014
        %v1016 = vand.u32 %v947, 4294901760
        %v1017 = vsub.f32 %v947, %v1016
        %v1018 = vand.u32 %v1017, 4294901760
        %v1019 = vsub.f32 %v1017, %v1018
        %v1020 = vand.u32 %v1019, 4294901760
        %1021 = vmatpush.msra.mxu0 %v1020
        %v1022 = vand.u32 %v956, 4294901760
        %1023 = vmatmul.f32.gmra.mxu0 %v1022
        %v1024 = vpop.f32.mrf.mxu0
        %v1025 = vadd.f32 %v986, %v1024
        %v1026 = vand.u32 %v959, 4294901760
        %1027 = vmatmul.f32.gmra.mxu0 %v1026
        %v1028 = vpop.f32.mrf.mxu0
        %v1029 = vadd.f32 %v994, %v1028
        %1030 = vdwg.mxu0
        %1031 = vmatpush.msra.mxu0 0.0
        %1032 = vmatpush.msra.mxu0 0.0
        %1033 = vmatpush.msra.mxu0 0.0
        %1034 = vmatpush.msra.mxu0 0.0
        %1035 = vmatpush.msra.mxu0 0.0
        %1036 = vmatpush.msra.mxu0 0.0
        %1037 = vmatpush.msra.mxu0 0.0
        %1038 = vmatpush.msra.mxu0 0.0
        %1039 = vmatpush.msra.mxu0 0.0
        %1040 = vmatpush.msra.mxu0 0.0
        %1041 = vmatpush.msra.mxu0 0.0
        %1042 = vmatpush.msra.mxu0 0.0
        %1043 = vmatpush.msra.mxu0 0.0
        %1044 = vmatpush.msra.mxu0 0.0
        %v1045 = vand.u32 %v949, 4294901760
        %v1046 = vsub.f32 %v949, %v1045
        %1047 = vmatpush.msra.mxu0 %v1046
        %v1048 = vand.u32 %v947, 4294901760
        %v1049 = vsub.f32 %v947, %v1048
        %1050 = vmatpush.msra.mxu0 %v1049
        %v1051 = vand.u32 %v956, 4294901760
        %v1052 = vsub.f32 %v956, %v1051
        %1053 = vmatmul.f32.gmra.mxu0 %v1052
        %v1054 = vpop.f32.mrf.mxu0
        %v1055 = vadd.f32 %v1025, %v1054
        %v1056 = vand.u32 %v959, 4294901760
        %v1057 = vsub.f32 %v959, %v1056
        %1058 = vmatmul.f32.gmra.mxu0 %v1057
        %v1059 = vpop.f32.mrf.mxu0
        %v1060 = vadd.f32 %v1029, %v1059
        %1061 = vdwg.mxu0
        %1062 = vmatpush.msra.mxu0 0.0
        %1063 = vmatpush.msra.mxu0 0.0
        %1064 = vmatpush.msra.mxu0 0.0
        %1065 = vmatpush.msra.mxu0 0.0
        %1066 = vmatpush.msra.mxu0 0.0
        %1067 = vmatpush.msra.mxu0 0.0
        %1068 = vmatpush.msra.mxu0 0.0
        %1069 = vmatpush.msra.mxu0 0.0
        %1070 = vmatpush.msra.mxu0 0.0
        %1071 = vmatpush.msra.mxu0 0.0
        %1072 = vmatpush.msra.mxu0 0.0
        %1073 = vmatpush.msra.mxu0 0.0
        %1074 = vmatpush.msra.mxu0 0.0
        %1075 = vmatpush.msra.mxu0 0.0
        %v1076 = vand.u32 %v949, 4294901760
        %1077 = vmatpush.msra.mxu0 %v1076
        %v1078 = vand.u32 %v947, 4294901760
        %1079 = vmatpush.msra.mxu0 %v1078
        %v1080 = vand.u32 %v956, 4294901760
        %v1081 = vsub.f32 %v956, %v1080
        %v1082 = vand.u32 %v1081, 4294901760
        %1083 = vmatmul.f32.gmra.mxu0 %v1082
        %v1084 = vpop.f32.mrf.mxu0
        %v1085 = vadd.f32 %v1055, %v1084
        %v1086 = vand.u32 %v959, 4294901760
        %v1087 = vsub.f32 %v959, %v1086
        %v1088 = vand.u32 %v1087, 4294901760
        %1089 = vmatmul.f32.gmra.mxu0 %v1088
        %v1090 = vpop.f32.mrf.mxu0
        %v1091 = vadd.f32 %v1060, %v1090
        %1092 = vdwg.mxu0
        %1093 = vmatpush.msra.mxu0 0.0
        %1094 = vmatpush.msra.mxu0 0.0
        %1095 = vmatpush.msra.mxu0 0.0
        %1096 = vmatpush.msra.mxu0 0.0
        %1097 = vmatpush.msra.mxu0 0.0
        %1098 = vmatpush.msra.mxu0 0.0
        %1099 = vmatpush.msra.mxu0 0.0
        %1100 = vmatpush.msra.mxu0 0.0
        %1101 = vmatpush.msra.mxu0 0.0
        %1102 = vmatpush.msra.mxu0 0.0
        %1103 = vmatpush.msra.mxu0 0.0
        %1104 = vmatpush.msra.mxu0 0.0
        %1105 = vmatpush.msra.mxu0 0.0
        %1106 = vmatpush.msra.mxu0 0.0
        %v1107 = vand.u32 %v949, 4294901760
        %v1108 = vsub.f32 %v949, %v1107
        %v1109 = vand.u32 %v1108, 4294901760
        %1110 = vmatpush.msra.mxu0 %v1109
        %v1111 = vand.u32 %v947, 4294901760
        %v1112 = vsub.f32 %v947, %v1111
        %v1113 = vand.u32 %v1112, 4294901760
        %1114 = vmatpush.msra.mxu0 %v1113
        %v1115 = vand.u32 %v956, 4294901760
        %1116 = vmatmul.f32.gmra.mxu0 %v1115
        %v1117 = vpop.f32.mrf.mxu0
        %v1118 = vadd.f32 %v1085, %v1117
        %v1119 = vand.u32 %v959, 4294901760
        %1120 = vmatmul.f32.gmra.mxu0 %v1119
        %v1121 = vpop.f32.mrf.mxu0
        %v1122 = vadd.f32 %v1091, %v1121
        %1123 = vdwg.mxu0
        %1124 = vmatpush.msra.mxu0 0.0
        %1125 = vmatpush.msra.mxu0 0.0
        %1126 = vmatpush.msra.mxu0 0.0
        %1127 = vmatpush.msra.mxu0 0.0
        %1128 = vmatpush.msra.mxu0 0.0
        %1129 = vmatpush.msra.mxu0 0.0
        %1130 = vmatpush.msra.mxu0 0.0
        %1131 = vmatpush.msra.mxu0 0.0
        %1132 = vmatpush.msra.mxu0 0.0
        %1133 = vmatpush.msra.mxu0 0.0
        %1134 = vmatpush.msra.mxu0 0.0
        %1135 = vmatpush.msra.mxu0 0.0
        %1136 = vmatpush.msra.mxu0 0.0
        %1137 = vmatpush.msra.mxu0 0.0
        %v1138 = vand.u32 %v949, 4294901760
        %1139 = vmatpush.msra.mxu0 %v1138
        %v1140 = vand.u32 %v947, 4294901760
        %1141 = vmatpush.msra.mxu0 %v1140
        %v1142 = vand.u32 %v956, 4294901760
        %1143 = vmatmul.f32.gmra.mxu0 %v1142
        %v1144 = vpop.f32.mrf.mxu0
        %v1145 = vadd.f32 %v1118, %v1144
        %v1146 = vand.u32 %v959, 4294901760
        %1147 = vmatmul.f32.gmra.mxu0 %v1146
        %v1148 = vpop.f32.mrf.mxu0
        %v1149 = vadd.f32 %v1122, %v1148
        %1150 = vdwg.mxu0
        %1151 = vmatpush.msra.mxu0 0.0
        %1152 = vmatpush.msra.mxu0 0.0
        %1153 = vmatpush.msra.mxu0 0.0
        %1154 = vmatpush.msra.mxu0 0.0
        %1155 = vmatpush.msra.mxu0 0.0
        %1156 = vmatpush.msra.mxu0 0.0
        %1157 = vmatpush.msra.mxu0 0.0
        %1158 = vmatpush.msra.mxu0 0.0
        %1159 = vmatpush.msra.mxu0 0.0
        %1160 = vmatpush.msra.mxu0 0.0
        %1161 = vmatpush.msra.mxu0 0.0
        %1162 = vmatpush.msra.mxu0 0.0
        %1163 = vmatpush.msra.mxu0 0.0
        %1164 = vmatpush.msra.mxu0 0.0
        %v1165 = vand.u32 %v950, 4294901760
        %1166 = vmatpush.msra.mxu0 %v1165
        %v1167 = vand.u32 %v948, 4294901760
        %1168 = vmatpush.msra.mxu0 %v1167
        %v1169 = vand.u32 %v956, 4294901760
        %v1170 = vsub.f32 %v956, %v1169
        %v1171 = vand.u32 %v1170, 4294901760
        %v1172 = vsub.f32 %v1170, %v1171
        %v1173 = vand.u32 %v1172, 4294901760
        %1174 = vmatmul.f32.gmra.mxu0 %v1173
        %v1175 = vpop.f32.mrf.mxu0
        %v1176 = vadd.f32 %v922, %v1175
        %v1177 = vand.u32 %v959, 4294901760
        %v1178 = vsub.f32 %v959, %v1177
        %v1179 = vand.u32 %v1178, 4294901760
        %v1180 = vsub.f32 %v1178, %v1179
        %v1181 = vand.u32 %v1180, 4294901760
        %1182 = vmatmul.f32.gmra.mxu0 %v1181
        %v1183 = vpop.f32.mrf.mxu0
        %v1184 = vadd.f32 %v926, %v1183
        %1185 = vdwg.mxu0
        %1186 = vmatpush.msra.mxu0 0.0
        %1187 = vmatpush.msra.mxu0 0.0
        %1188 = vmatpush.msra.mxu0 0.0
        %1189 = vmatpush.msra.mxu0 0.0
        %1190 = vmatpush.msra.mxu0 0.0
        %1191 = vmatpush.msra.mxu0 0.0
        %1192 = vmatpush.msra.mxu0 0.0
        %1193 = vmatpush.msra.mxu0 0.0
        %1194 = vmatpush.msra.mxu0 0.0
        %1195 = vmatpush.msra.mxu0 0.0
        %1196 = vmatpush.msra.mxu0 0.0
        %1197 = vmatpush.msra.mxu0 0.0
        %1198 = vmatpush.msra.mxu0 0.0
        %1199 = vmatpush.msra.mxu0 0.0
        %v1200 = vand.u32 %v950, 4294901760
        %v1201 = vsub.f32 %v950, %v1200
        %v1202 = vand.u32 %v1201, 4294901760
        %v1203 = vsub.f32 %v1201, %v1202
        %v1204 = vand.u32 %v1203, 4294901760
        %1205 = vmatpush.msra.mxu0 %v1204
        %v1206 = vand.u32 %v948, 4294901760
        %v1207 = vsub.f32 %v948, %v1206
        %v1208 = vand.u32 %v1207, 4294901760
        %v1209 = vsub.f32 %v1207, %v1208
        %v1210 = vand.u32 %v1209, 4294901760
        %1211 = vmatpush.msra.mxu0 %v1210
        %v1212 = vand.u32 %v956, 4294901760
        %1213 = vmatmul.f32.gmra.mxu0 %v1212
        %v1214 = vpop.f32.mrf.mxu0
        %v1215 = vadd.f32 %v1176, %v1214
        %v1216 = vand.u32 %v959, 4294901760
        %1217 = vmatmul.f32.gmra.mxu0 %v1216
        %v1218 = vpop.f32.mrf.mxu0
        %v1219 = vadd.f32 %v1184, %v1218
        %1220 = vdwg.mxu0
        %1221 = vmatpush.msra.mxu0 0.0
        %1222 = vmatpush.msra.mxu0 0.0
        %1223 = vmatpush.msra.mxu0 0.0
        %1224 = vmatpush.msra.mxu0 0.0
        %1225 = vmatpush.msra.mxu0 0.0
        %1226 = vmatpush.msra.mxu0 0.0
        %1227 = vmatpush.msra.mxu0 0.0
        %1228 = vmatpush.msra.mxu0 0.0
        %1229 = vmatpush.msra.mxu0 0.0
        %1230 = vmatpush.msra.mxu0 0.0
        %1231 = vmatpush.msra.mxu0 0.0
        %1232 = vmatpush.msra.mxu0 0.0
        %1233 = vmatpush.msra.mxu0 0.0
        %1234 = vmatpush.msra.mxu0 0.0
        %v1235 = vand.u32 %v950, 4294901760
        %v1236 = vsub.f32 %v950, %v1235
        %1237 = vmatpush.msra.mxu0 %v1236
        %v1238 = vand.u32 %v948, 4294901760
        %v1239 = vsub.f32 %v948, %v1238
        %1240 = vmatpush.msra.mxu0 %v1239
        %v1241 = vand.u32 %v956, 4294901760
        %v1242 = vsub.f32 %v956, %v1241
        %1243 = vmatmul.f32.gmra.mxu0 %v1242
        %v1244 = vpop.f32.mrf.mxu0
        %v1245 = vadd.f32 %v1215, %v1244
        %v1246 = vand.u32 %v959, 4294901760
        %v1247 = vsub.f32 %v959, %v1246
        %1248 = vmatmul.f32.gmra.mxu0 %v1247
        %v1249 = vpop.f32.mrf.mxu0
        %v1250 = vadd.f32 %v1219, %v1249
        %1251 = vdwg.mxu0
        %1252 = vmatpush.msra.mxu0 0.0
        %1253 = vmatpush.msra.mxu0 0.0
        %1254 = vmatpush.msra.mxu0 0.0
        %1255 = vmatpush.msra.mxu0 0.0
        %1256 = vmatpush.msra.mxu0 0.0
        %1257 = vmatpush.msra.mxu0 0.0
        %1258 = vmatpush.msra.mxu0 0.0
        %1259 = vmatpush.msra.mxu0 0.0
        %1260 = vmatpush.msra.mxu0 0.0
        %1261 = vmatpush.msra.mxu0 0.0
        %1262 = vmatpush.msra.mxu0 0.0
        %1263 = vmatpush.msra.mxu0 0.0
        %1264 = vmatpush.msra.mxu0 0.0
        %1265 = vmatpush.msra.mxu0 0.0
        %v1266 = vand.u32 %v950, 4294901760
        %1267 = vmatpush.msra.mxu0 %v1266
        %v1268 = vand.u32 %v948, 4294901760
        %1269 = vmatpush.msra.mxu0 %v1268
        %v1270 = vand.u32 %v956, 4294901760
        %v1271 = vsub.f32 %v956, %v1270
        %v1272 = vand.u32 %v1271, 4294901760
        %1273 = vmatmul.f32.gmra.mxu0 %v1272
        %v1274 = vpop.f32.mrf.mxu0
        %v1275 = vadd.f32 %v1245, %v1274
        %v1276 = vand.u32 %v959, 4294901760
        %v1277 = vsub.f32 %v959, %v1276
        %v1278 = vand.u32 %v1277, 4294901760
        %1279 = vmatmul.f32.gmra.mxu0 %v1278
        %v1280 = vpop.f32.mrf.mxu0
        %v1281 = vadd.f32 %v1250, %v1280
        %1282 = vdwg.mxu0
        %1283 = vmatpush.msra.mxu0 0.0
        %1284 = vmatpush.msra.mxu0 0.0
        %1285 = vmatpush.msra.mxu0 0.0
        %1286 = vmatpush.msra.mxu0 0.0
        %1287 = vmatpush.msra.mxu0 0.0
        %1288 = vmatpush.msra.mxu0 0.0
        %1289 = vmatpush.msra.mxu0 0.0
        %1290 = vmatpush.msra.mxu0 0.0
        %1291 = vmatpush.msra.mxu0 0.0
        %1292 = vmatpush.msra.mxu0 0.0
        %1293 = vmatpush.msra.mxu0 0.0
        %1294 = vmatpush.msra.mxu0 0.0
        %1295 = vmatpush.msra.mxu0 0.0
        %1296 = vmatpush.msra.mxu0 0.0
        %v1297 = vand.u32 %v950, 4294901760
        %v1298 = vsub.f32 %v950, %v1297
        %v1299 = vand.u32 %v1298, 4294901760
        %1300 = vmatpush.msra.mxu0 %v1299
        %v1301 = vand.u32 %v948, 4294901760
        %v1302 = vsub.f32 %v948, %v1301
        %v1303 = vand.u32 %v1302, 4294901760
        %1304 = vmatpush.msra.mxu0 %v1303
        %v1305 = vand.u32 %v956, 4294901760
        %1306 = vmatmul.f32.gmra.mxu0 %v1305
        %v1307 = vpop.f32.mrf.mxu0
        %v1308 = vadd.f32 %v1275, %v1307
        %v1309 = vand.u32 %v959, 4294901760
        %1310 = vmatmul.f32.gmra.mxu0 %v1309
        %v1311 = vpop.f32.mrf.mxu0
        %v1312 = vadd.f32 %v1281, %v1311
        %1313 = vdwg.mxu0
        %1314 = vmatpush.msra.mxu0 0.0
        %1315 = vmatpush.msra.mxu0 0.0
        %1316 = vmatpush.msra.mxu0 0.0
        %1317 = vmatpush.msra.mxu0 0.0
        %1318 = vmatpush.msra.mxu0 0.0
        %1319 = vmatpush.msra.mxu0 0.0
        %1320 = vmatpush.msra.mxu0 0.0
        %1321 = vmatpush.msra.mxu0 0.0
        %1322 = vmatpush.msra.mxu0 0.0
        %1323 = vmatpush.msra.mxu0 0.0
        %1324 = vmatpush.msra.mxu0 0.0
        %1325 = vmatpush.msra.mxu0 0.0
        %1326 = vmatpush.msra.mxu0 0.0
        %1327 = vmatpush.msra.mxu0 0.0
        %v1328 = vand.u32 %v950, 4294901760
        %1329 = vmatpush.msra.mxu0 %v1328
        %v1330 = vand.u32 %v948, 4294901760
        %1331 = vmatpush.msra.mxu0 %v1330
        %v1332 = vand.u32 %v956, 4294901760
        %1333 = vmatmul.f32.gmra.mxu0 %v1332
        %v1334 = vpop.f32.mrf.mxu0
        %v1335 = vadd.f32 %v1308, %v1334
        %v1336 = vand.u32 %v959, 4294901760
        %1337 = vmatmul.f32.gmra.mxu0 %v1336
        %v1338 = vpop.f32.mrf.mxu0
        %v1339 = vadd.f32 %v1312, %v1338
        %1340 = vdwg.mxu0
        %s1341 = scalar_lea.vmem [#allocation8], 32
        %v1342 = vld [vmem:[%s1341] sm:$0xff]
        %v1343 = vld [vmem:[%s1341 + $0x8] sm:$0xff]
        %1346 = vrot.lane.b32.xlu0 %v531, 126
        %v1347 = vpop.permute.xlu0 %1346
        %1348 = vrot.lane.b32.xlu0 %v532, 126
        %v1349 = vpop.permute.xlu0 %1348
        %1350 = vrot.lane.b32.xlu0 %v529, 126
        %v1351 = vpop.permute.xlu0 %1350
        %1352 = vrot.lane.b32.xlu0 %v533, 126
        %v1353 = vpop.permute.xlu0 %1352
        %1354 = vrot.lane.b32.xlu0 %v534, 126
        %v1355 = vpop.permute.xlu0 %1354
        %1356 = vrot.lane.b32.xlu0 %v530, 126
        %v1357 = vpop.permute.xlu0 %1356
        %vm1358 = vcmask 1031168
        %v1359 = vsel %vm1358, %v1347, %v1349
        %v1360 = vsel %vm1358, %v1349, %v1351
        %v1361 = vsel %vm1358, %v1353, %v1355
        %v1362 = vsel %vm1358, %v1355, %v1357
        %v1368 = vsel %vm541, %v1342, 0
        %v1371 = vsel %vm541, %v1343, 0
        %1373 = vmatpush.msra.mxu0 0.0
        %1374 = vmatpush.msra.mxu0 0.0
        %1375 = vmatpush.msra.mxu0 0.0
        %1376 = vmatpush.msra.mxu0 0.0
        %1377 = vmatpush.msra.mxu0 0.0
        %1378 = vmatpush.msra.mxu0 0.0
        %1379 = vmatpush.msra.mxu0 0.0
        %1380 = vmatpush.msra.mxu0 0.0
        %1381 = vmatpush.msra.mxu0 0.0
        %1382 = vmatpush.msra.mxu0 0.0
        %1383 = vmatpush.msra.mxu0 0.0
        %1384 = vmatpush.msra.mxu0 0.0
        %1385 = vmatpush.msra.mxu0 0.0
        %1386 = vmatpush.msra.mxu0 0.0
        %v1387 = vand.u32 %v1361, 4294901760
        %1388 = vmatpush.msra.mxu0 %v1387
        %v1389 = vand.u32 %v1359, 4294901760
        %1390 = vmatpush.msra.mxu0 %v1389
        %v1391 = vand.u32 %v1368, 4294901760
        %v1392 = vsub.f32 %v1368, %v1391
        %v1393 = vand.u32 %v1392, 4294901760
        %v1394 = vsub.f32 %v1392, %v1393
        %v1395 = vand.u32 %v1394, 4294901760
        %1396 = vmatmul.f32.gmra.mxu0 %v1395
        %v1397 = vpop.f32.mrf.mxu0
        %v1398 = vadd.f32 0.0, %v1397
        %v1399 = vand.u32 %v1371, 4294901760
        %v1400 = vsub.f32 %v1371, %v1399
        %v1401 = vand.u32 %v1400, 4294901760
        %v1402 = vsub.f32 %v1400, %v1401
        %v1403 = vand.u32 %v1402, 4294901760
        %1404 = vmatmul.f32.gmra.mxu0 %v1403
        %v1405 = vpop.f32.mrf.mxu0
        %v1406 = vadd.f32 0.0, %v1405
        %1407 = vdwg.mxu0
        %1408 = vmatpush.msra.mxu0 0.0
        %1409 = vmatpush.msra.mxu0 0.0
        %1410 = vmatpush.msra.mxu0 0.0
        %1411 = vmatpush.msra.mxu0 0.0
        %1412 = vmatpush.msra.mxu0 0.0
        %1413 = vmatpush.msra.mxu0 0.0
        %1414 = vmatpush.msra.mxu0 0.0
        %1415 = vmatpush.msra.mxu0 0.0
        %1416 = vmatpush.msra.mxu0 0.0
        %1417 = vmatpush.msra.mxu0 0.0
        %1418 = vmatpush.msra.mxu0 0.0
        %1419 = vmatpush.msra.mxu0 0.0
        %1420 = vmatpush.msra.mxu0 0.0
        %1421 = vmatpush.msra.mxu0 0.0
        %v1422 = vand.u32 %v1361, 4294901760
        %v1423 = vsub.f32 %v1361, %v1422
        %v1424 = vand.u32 %v1423, 4294901760
        %v1425 = vsub.f32 %v1423, %v1424
        %v1426 = vand.u32 %v1425, 4294901760
        %1427 = vmatpush.msra.mxu0 %v1426
        %v1428 = vand.u32 %v1359, 4294901760
        %v1429 = vsub.f32 %v1359, %v1428
        %v1430 = vand.u32 %v1429, 4294901760
        %v1431 = vsub.f32 %v1429, %v1430
        %v1432 = vand.u32 %v1431, 4294901760
        %1433 = vmatpush.msra.mxu0 %v1432
        %v1434 = vand.u32 %v1368, 4294901760
        %1435 = vmatmul.f32.gmra.mxu0 %v1434
        %v1436 = vpop.f32.mrf.mxu0
        %v1437 = vadd.f32 %v1398, %v1436
        %v1438 = vand.u32 %v1371, 4294901760
        %1439 = vmatmul.f32.gmra.mxu0 %v1438
        %v1440 = vpop.f32.mrf.mxu0
        %v1441 = vadd.f32 %v1406, %v1440
        %1442 = vdwg.mxu0
        %1443 = vmatpush.msra.mxu0 0.0
        %1444 = vmatpush.msra.mxu0 0.0
        %1445 = vmatpush.msra.mxu0 0.0
        %1446 = vmatpush.msra.mxu0 0.0
        %1447 = vmatpush.msra.mxu0 0.0
        %1448 = vmatpush.msra.mxu0 0.0
        %1449 = vmatpush.msra.mxu0 0.0
        %1450 = vmatpush.msra.mxu0 0.0
        %1451 = vmatpush.msra.mxu0 0.0
        %1452 = vmatpush.msra.mxu0 0.0
        %1453 = vmatpush.msra.mxu0 0.0
        %1454 = vmatpush.msra.mxu0 0.0
        %1455 = vmatpush.msra.mxu0 0.0
        %1456 = vmatpush.msra.mxu0 0.0
        %v1457 = vand.u32 %v1361, 4294901760
        %v1458 = vsub.f32 %v1361, %v1457
        %1459 = vmatpush.msra.mxu0 %v1458
        %v1460 = vand.u32 %v1359, 4294901760
        %v1461 = vsub.f32 %v1359, %v1460
        %1462 = vmatpush.msra.mxu0 %v1461
        %v1463 = vand.u32 %v1368, 4294901760
        %v1464 = vsub.f32 %v1368, %v1463
        %1465 = vmatmul.f32.gmra.mxu0 %v1464
        %v1466 = vpop.f32.mrf.mxu0
        %v1467 = vadd.f32 %v1437, %v1466
        %v1468 = vand.u32 %v1371, 4294901760
        %v1469 = vsub.f32 %v1371, %v1468
        %1470 = vmatmul.f32.gmra.mxu0 %v1469
        %v1471 = vpop.f32.mrf.mxu0
        %v1472 = vadd.f32 %v1441, %v1471
        %1473 = vdwg.mxu0
        %1474 = vmatpush.msra.mxu0 0.0
        %1475 = vmatpush.msra.mxu0 0.0
        %1476 = vmatpush.msra.mxu0 0.0
        %1477 = vmatpush.msra.mxu0 0.0
        %1478 = vmatpush.msra.mxu0 0.0
        %1479 = vmatpush.msra.mxu0 0.0
        %1480 = vmatpush.msra.mxu0 0.0
        %1481 = vmatpush.msra.mxu0 0.0
        %1482 = vmatpush.msra.mxu0 0.0
        %1483 = vmatpush.msra.mxu0 0.0
        %1484 = vmatpush.msra.mxu0 0.0
        %1485 = vmatpush.msra.mxu0 0.0
        %1486 = vmatpush.msra.mxu0 0.0
        %1487 = vmatpush.msra.mxu0 0.0
        %v1488 = vand.u32 %v1361, 4294901760
        %1489 = vmatpush.msra.mxu0 %v1488
        %v1490 = vand.u32 %v1359, 4294901760
        %1491 = vmatpush.msra.mxu0 %v1490
        %v1492 = vand.u32 %v1368, 4294901760
        %v1493 = vsub.f32 %v1368, %v1492
        %v1494 = vand.u32 %v1493, 4294901760
        %1495 = vmatmul.f32.gmra.mxu0 %v1494
        %v1496 = vpop.f32.mrf.mxu0
        %v1497 = vadd.f32 %v1467, %v1496
        %v1498 = vand.u32 %v1371, 4294901760
        %v1499 = vsub.f32 %v1371, %v1498
        %v1500 = vand.u32 %v1499, 4294901760
        %1501 = vmatmul.f32.gmra.mxu0 %v1500
        %v1502 = vpop.f32.mrf.mxu0
        %v1503 = vadd.f32 %v1472, %v1502
        %1504 = vdwg.mxu0
        %1505 = vmatpush.msra.mxu0 0.0
        %1506 = vmatpush.msra.mxu0 0.0
        %1507 = vmatpush.msra.mxu0 0.0
        %1508 = vmatpush.msra.mxu0 0.0
        %1509 = vmatpush.msra.mxu0 0.0
        %1510 = vmatpush.msra.mxu0 0.0
        %1511 = vmatpush.msra.mxu0 0.0
        %1512 = vmatpush.msra.mxu0 0.0
        %1513 = vmatpush.msra.mxu0 0.0
        %1514 = vmatpush.msra.mxu0 0.0
        %1515 = vmatpush.msra.mxu0 0.0
        %1516 = vmatpush.msra.mxu0 0.0
        %1517 = vmatpush.msra.mxu0 0.0
        %1518 = vmatpush.msra.mxu0 0.0
        %v1519 = vand.u32 %v1361, 4294901760
        %v1520 = vsub.f32 %v1361, %v1519
        %v1521 = vand.u32 %v1520, 4294901760
        %1522 = vmatpush.msra.mxu0 %v1521
        %v1523 = vand.u32 %v1359, 4294901760
        %v1524 = vsub.f32 %v1359, %v1523
        %v1525 = vand.u32 %v1524, 4294901760
        %1526 = vmatpush.msra.mxu0 %v1525
        %v1527 = vand.u32 %v1368, 4294901760
        %1528 = vmatmul.f32.gmra.mxu0 %v1527
        %v1529 = vpop.f32.mrf.mxu0
        %v1530 = vadd.f32 %v1497, %v1529
        %v1531 = vand.u32 %v1371, 4294901760
        %1532 = vmatmul.f32.gmra.mxu0 %v1531
        %v1533 = vpop.f32.mrf.mxu0
        %v1534 = vadd.f32 %v1503, %v1533
        %1535 = vdwg.mxu0
        %1536 = vmatpush.msra.mxu0 0.0
        %1537 = vmatpush.msra.mxu0 0.0
        %1538 = vmatpush.msra.mxu0 0.0
        %1539 = vmatpush.msra.mxu0 0.0
        %1540 = vmatpush.msra.mxu0 0.0
        %1541 = vmatpush.msra.mxu0 0.0
        %1542 = vmatpush.msra.mxu0 0.0
        %1543 = vmatpush.msra.mxu0 0.0
        %1544 = vmatpush.msra.mxu0 0.0
        %1545 = vmatpush.msra.mxu0 0.0
        %1546 = vmatpush.msra.mxu0 0.0
        %1547 = vmatpush.msra.mxu0 0.0
        %1548 = vmatpush.msra.mxu0 0.0
        %1549 = vmatpush.msra.mxu0 0.0
        %v1550 = vand.u32 %v1361, 4294901760
        %1551 = vmatpush.msra.mxu0 %v1550
        %v1552 = vand.u32 %v1359, 4294901760
        %1553 = vmatpush.msra.mxu0 %v1552
        %v1554 = vand.u32 %v1368, 4294901760
        %1555 = vmatmul.f32.gmra.mxu0 %v1554
        %v1556 = vpop.f32.mrf.mxu0
        %v1557 = vadd.f32 %v1530, %v1556
        %v1558 = vand.u32 %v1371, 4294901760
        %1559 = vmatmul.f32.gmra.mxu0 %v1558
        %v1560 = vpop.f32.mrf.mxu0
        %v1561 = vadd.f32 %v1534, %v1560
        %1562 = vdwg.mxu0
        %1563 = vmatpush.msra.mxu0 0.0
        %1564 = vmatpush.msra.mxu0 0.0
        %1565 = vmatpush.msra.mxu0 0.0
        %1566 = vmatpush.msra.mxu0 0.0
        %1567 = vmatpush.msra.mxu0 0.0
        %1568 = vmatpush.msra.mxu0 0.0
        %1569 = vmatpush.msra.mxu0 0.0
        %1570 = vmatpush.msra.mxu0 0.0
        %1571 = vmatpush.msra.mxu0 0.0
        %1572 = vmatpush.msra.mxu0 0.0
        %1573 = vmatpush.msra.mxu0 0.0
        %1574 = vmatpush.msra.mxu0 0.0
        %1575 = vmatpush.msra.mxu0 0.0
        %1576 = vmatpush.msra.mxu0 0.0
        %v1577 = vand.u32 %v1362, 4294901760
        %1578 = vmatpush.msra.mxu0 %v1577
        %v1579 = vand.u32 %v1360, 4294901760
        %1580 = vmatpush.msra.mxu0 %v1579
        %v1581 = vand.u32 %v1368, 4294901760
        %v1582 = vsub.f32 %v1368, %v1581
        %v1583 = vand.u32 %v1582, 4294901760
        %v1584 = vsub.f32 %v1582, %v1583
        %v1585 = vand.u32 %v1584, 4294901760
        %1586 = vmatmul.f32.gmra.mxu0 %v1585
        %v1587 = vpop.f32.mrf.mxu0
        %v1588 = vadd.f32 0.0, %v1587
        %v1589 = vand.u32 %v1371, 4294901760
        %v1590 = vsub.f32 %v1371, %v1589
        %v1591 = vand.u32 %v1590, 4294901760
        %v1592 = vsub.f32 %v1590, %v1591
        %v1593 = vand.u32 %v1592, 4294901760
        %1594 = vmatmul.f32.gmra.mxu0 %v1593
        %v1595 = vpop.f32.mrf.mxu0
        %v1596 = vadd.f32 0.0, %v1595
        %1597 = vdwg.mxu0
        %1598 = vmatpush.msra.mxu0 0.0
        %1599 = vmatpush.msra.mxu0 0.0
        %1600 = vmatpush.msra.mxu0 0.0
        %1601 = vmatpush.msra.mxu0 0.0
        %1602 = vmatpush.msra.mxu0 0.0
        %1603 = vmatpush.msra.mxu0 0.0
        %1604 = vmatpush.msra.mxu0 0.0
        %1605 = vmatpush.msra.mxu0 0.0
        %1606 = vmatpush.msra.mxu0 0.0
        %1607 = vmatpush.msra.mxu0 0.0
        %1608 = vmatpush.msra.mxu0 0.0
        %1609 = vmatpush.msra.mxu0 0.0
        %1610 = vmatpush.msra.mxu0 0.0
        %1611 = vmatpush.msra.mxu0 0.0
        %v1612 = vand.u32 %v1362, 4294901760
        %v1613 = vsub.f32 %v1362, %v1612
        %v1614 = vand.u32 %v1613, 4294901760
        %v1615 = vsub.f32 %v1613, %v1614
        %v1616 = vand.u32 %v1615, 4294901760
        %1617 = vmatpush.msra.mxu0 %v1616
        %v1618 = vand.u32 %v1360, 4294901760
        %v1619 = vsub.f32 %v1360, %v1618
        %v1620 = vand.u32 %v1619, 4294901760
        %v1621 = vsub.f32 %v1619, %v1620
        %v1622 = vand.u32 %v1621, 4294901760
        %1623 = vmatpush.msra.mxu0 %v1622
        %v1624 = vand.u32 %v1368, 4294901760
        %1625 = vmatmul.f32.gmra.mxu0 %v1624
        %v1626 = vpop.f32.mrf.mxu0
        %v1627 = vadd.f32 %v1588, %v1626
        %v1628 = vand.u32 %v1371, 4294901760
        %1629 = vmatmul.f32.gmra.mxu0 %v1628
        %v1630 = vpop.f32.mrf.mxu0
        %v1631 = vadd.f32 %v1596, %v1630
        %1632 = vdwg.mxu0
        %1633 = vmatpush.msra.mxu0 0.0
        %1634 = vmatpush.msra.mxu0 0.0
        %1635 = vmatpush.msra.mxu0 0.0
        %1636 = vmatpush.msra.mxu0 0.0
        %1637 = vmatpush.msra.mxu0 0.0
        %1638 = vmatpush.msra.mxu0 0.0
        %1639 = vmatpush.msra.mxu0 0.0
        %1640 = vmatpush.msra.mxu0 0.0
        %1641 = vmatpush.msra.mxu0 0.0
        %1642 = vmatpush.msra.mxu0 0.0
        %1643 = vmatpush.msra.mxu0 0.0
        %1644 = vmatpush.msra.mxu0 0.0
        %1645 = vmatpush.msra.mxu0 0.0
        %1646 = vmatpush.msra.mxu0 0.0
        %v1647 = vand.u32 %v1362, 4294901760
        %v1648 = vsub.f32 %v1362, %v1647
        %1649 = vmatpush.msra.mxu0 %v1648
        %v1650 = vand.u32 %v1360, 4294901760
        %v1651 = vsub.f32 %v1360, %v1650
        %1652 = vmatpush.msra.mxu0 %v1651
        %v1653 = vand.u32 %v1368, 4294901760
        %v1654 = vsub.f32 %v1368, %v1653
        %1655 = vmatmul.f32.gmra.mxu0 %v1654
        %v1656 = vpop.f32.mrf.mxu0
        %v1657 = vadd.f32 %v1627, %v1656
        %v1658 = vand.u32 %v1371, 4294901760
        %v1659 = vsub.f32 %v1371, %v1658
        %1660 = vmatmul.f32.gmra.mxu0 %v1659
        %v1661 = vpop.f32.mrf.mxu0
        %v1662 = vadd.f32 %v1631, %v1661
        %1663 = vdwg.mxu0
        %1664 = vmatpush.msra.mxu0 0.0
        %1665 = vmatpush.msra.mxu0 0.0
        %1666 = vmatpush.msra.mxu0 0.0
        %1667 = vmatpush.msra.mxu0 0.0
        %1668 = vmatpush.msra.mxu0 0.0
        %1669 = vmatpush.msra.mxu0 0.0
        %1670 = vmatpush.msra.mxu0 0.0
        %1671 = vmatpush.msra.mxu0 0.0
        %1672 = vmatpush.msra.mxu0 0.0
        %1673 = vmatpush.msra.mxu0 0.0
        %1674 = vmatpush.msra.mxu0 0.0
        %1675 = vmatpush.msra.mxu0 0.0
        %1676 = vmatpush.msra.mxu0 0.0
        %1677 = vmatpush.msra.mxu0 0.0
        %v1678 = vand.u32 %v1362, 4294901760
        %1679 = vmatpush.msra.mxu0 %v1678
        %v1680 = vand.u32 %v1360, 4294901760
        %1681 = vmatpush.msra.mxu0 %v1680
        %v1682 = vand.u32 %v1368, 4294901760
        %v1683 = vsub.f32 %v1368, %v1682
        %v1684 = vand.u32 %v1683, 4294901760
        %1685 = vmatmul.f32.gmra.mxu0 %v1684
        %v1686 = vpop.f32.mrf.mxu0
        %v1687 = vadd.f32 %v1657, %v1686
        %v1688 = vand.u32 %v1371, 4294901760
        %v1689 = vsub.f32 %v1371, %v1688
        %v1690 = vand.u32 %v1689, 4294901760
        %1691 = vmatmul.f32.gmra.mxu0 %v1690
        %v1692 = vpop.f32.mrf.mxu0
        %v1693 = vadd.f32 %v1662, %v1692
        %1694 = vdwg.mxu0
        %1695 = vmatpush.msra.mxu0 0.0
        %1696 = vmatpush.msra.mxu0 0.0
        %1697 = vmatpush.msra.mxu0 0.0
        %1698 = vmatpush.msra.mxu0 0.0
        %1699 = vmatpush.msra.mxu0 0.0
        %1700 = vmatpush.msra.mxu0 0.0
        %1701 = vmatpush.msra.mxu0 0.0
        %1702 = vmatpush.msra.mxu0 0.0
        %1703 = vmatpush.msra.mxu0 0.0
        %1704 = vmatpush.msra.mxu0 0.0
        %1705 = vmatpush.msra.mxu0 0.0
        %1706 = vmatpush.msra.mxu0 0.0
        %1707 = vmatpush.msra.mxu0 0.0
        %1708 = vmatpush.msra.mxu0 0.0
        %v1709 = vand.u32 %v1362, 4294901760
        %v1710 = vsub.f32 %v1362, %v1709
        %v1711 = vand.u32 %v1710, 4294901760
        %1712 = vmatpush.msra.mxu0 %v1711
        %v1713 = vand.u32 %v1360, 4294901760
        %v1714 = vsub.f32 %v1360, %v1713
        %v1715 = vand.u32 %v1714, 4294901760
        %1716 = vmatpush.msra.mxu0 %v1715
        %v1717 = vand.u32 %v1368, 4294901760
        %1718 = vmatmul.f32.gmra.mxu0 %v1717
        %v1719 = vpop.f32.mrf.mxu0
        %v1720 = vadd.f32 %v1687, %v1719
        %v1721 = vand.u32 %v1371, 4294901760
        %1722 = vmatmul.f32.gmra.mxu0 %v1721
        %v1723 = vpop.f32.mrf.mxu0
        %v1724 = vadd.f32 %v1693, %v1723
        %1725 = vdwg.mxu0
        %1726 = vmatpush.msra.mxu0 0.0
        %1727 = vmatpush.msra.mxu0 0.0
        %1728 = vmatpush.msra.mxu0 0.0
        %1729 = vmatpush.msra.mxu0 0.0
        %1730 = vmatpush.msra.mxu0 0.0
        %1731 = vmatpush.msra.mxu0 0.0
        %1732 = vmatpush.msra.mxu0 0.0
        %1733 = vmatpush.msra.mxu0 0.0
        %1734 = vmatpush.msra.mxu0 0.0
        %1735 = vmatpush.msra.mxu0 0.0
        %1736 = vmatpush.msra.mxu0 0.0
        %1737 = vmatpush.msra.mxu0 0.0
        %1738 = vmatpush.msra.mxu0 0.0
        %1739 = vmatpush.msra.mxu0 0.0
        %v1740 = vand.u32 %v1362, 4294901760
        %1741 = vmatpush.msra.mxu0 %v1740
        %v1742 = vand.u32 %v1360, 4294901760
        %1743 = vmatpush.msra.mxu0 %v1742
        %v1744 = vand.u32 %v1368, 4294901760
        %1745 = vmatmul.f32.gmra.mxu0 %v1744
        %v1746 = vpop.f32.mrf.mxu0
        %v1747 = vadd.f32 %v1720, %v1746
        %v1748 = vand.u32 %v1371, 4294901760
        %1749 = vmatmul.f32.gmra.mxu0 %v1748
        %v1750 = vpop.f32.mrf.mxu0
        %v1751 = vadd.f32 %v1724, %v1750
        %1752 = vdwg.mxu0
        %v1753 = vadd.f32 %v1145, %v1557
        %v1754 = vadd.f32 %v1335, %v1747
        %v1755 = vadd.f32 %v1149, %v1561
        %v1756 = vadd.f32 %v1339, %v1751
        %v1757 = vld [vmem:[%s5] sm:$0xff]
        %v1758 = vld [vmem:[%s5 + $0x8] sm:$0xff]
        %1760 = vset.pattern.permute.xlu0 0
        %1761 = vperm.xlu0 %1760, %v1757
        %v1762 = vpop.permute.xlu0 %1761
        %1765 = vset.pattern.permute.xlu0 0
        %1766 = vperm.xlu0 %1765, %v1758
        %v1767 = vpop.permute.xlu0 %1766
        %v1769 = vadd.f32 %v1753, %v1762
        %v1770 = vadd.f32 %v1754, %v1762
        %v1771 = vadd.f32 %v1755, %v1767
        %v1772 = vadd.f32 %v1756, %v1767
        %v1773 = vmax.f32 %v1769, 0.0
        %v1774 = vmax.f32 %v1770, 0.0
        %v1775 = vmax.f32 %v1771, 0.0
        %v1776 = vmax.f32 %v1772, 0.0
        %v1777 = vld [vmem:[%s6] sm:$0xff]
        %v1778 = vld [vmem:[%s6 + $0x8] sm:$0xff]
        %v1779 = vld [vmem:[%s7] sm:$0xff]
        %v1780 = vld [vmem:[%s7 + $0x8] sm:$0xff]
        %1782 = vset.pattern.permute.xlu0 0
        %1783 = vperm.xlu0 %1782, %v1779
        %v1784 = vpop.permute.xlu0 %1783
        %1787 = vset.pattern.permute.xlu0 0
        %1788 = vperm.xlu0 %1787, %v1780
        %v1789 = vpop.permute.xlu0 %1788
        %v1792 = vsel %vm541, %v1777, 0
        %v1795 = vsel %vm541, %v1778, 0
        %1797 = vmatpush.msra.mxu0 0.0
        %1798 = vmatpush.msra.mxu0 0.0
        %1799 = vmatpush.msra.mxu0 0.0
        %1800 = vmatpush.msra.mxu0 0.0
        %1801 = vmatpush.msra.mxu0 0.0
        %1802 = vmatpush.msra.mxu0 0.0
        %1803 = vmatpush.msra.mxu0 0.0
        %1804 = vmatpush.msra.mxu0 0.0
        %1805 = vmatpush.msra.mxu0 0.0
        %1806 = vmatpush.msra.mxu0 0.0
        %1807 = vmatpush.msra.mxu0 0.0
        %1808 = vmatpush.msra.mxu0 0.0
        %1809 = vmatpush.msra.mxu0 0.0
        %1810 = vmatpush.msra.mxu0 0.0
        %v1811 = vand.u32 %v1775, 4294901760
        %1812 = vmatpush.msra.mxu0 %v1811
        %v1813 = vand.u32 %v1773, 4294901760
        %1814 = vmatpush.msra.mxu0 %v1813
        %v1815 = vand.u32 %v1792, 4294901760
        %v1816 = vsub.f32 %v1792, %v1815
        %v1817 = vand.u32 %v1816, 4294901760
        %v1818 = vsub.f32 %v1816, %v1817
        %v1819 = vand.u32 %v1818, 4294901760
        %1820 = vmatmul.f32.gmra.mxu0 %v1819
        %v1821 = vpop.f32.mrf.mxu0
        %v1822 = vadd.f32 %v1784, %v1821
        %v1823 = vand.u32 %v1795, 4294901760
        %v1824 = vsub.f32 %v1795, %v1823
        %v1825 = vand.u32 %v1824, 4294901760
        %v1826 = vsub.f32 %v1824, %v1825
        %v1827 = vand.u32 %v1826, 4294901760
        %1828 = vmatmul.f32.gmra.mxu0 %v1827
        %v1829 = vpop.f32.mrf.mxu0
        %v1830 = vadd.f32 %v1789, %v1829
        %1831 = vdwg.mxu0
        %1832 = vmatpush.msra.mxu0 0.0
        %1833 = vmatpush.msra.mxu0 0.0
        %1834 = vmatpush.msra.mxu0 0.0
        %1835 = vmatpush.msra.mxu0 0.0
        %1836 = vmatpush.msra.mxu0 0.0
        %1837 = vmatpush.msra.mxu0 0.0
        %1838 = vmatpush.msra.mxu0 0.0
        %1839 = vmatpush.msra.mxu0 0.0
        %1840 = vmatpush.msra.mxu0 0.0
        %1841 = vmatpush.msra.mxu0 0.0
        %1842 = vmatpush.msra.mxu0 0.0
        %1843 = vmatpush.msra.mxu0 0.0
        %1844 = vmatpush.msra.mxu0 0.0
        %1845 = vmatpush.msra.mxu0 0.0
        %v1846 = vand.u32 %v1775, 4294901760
        %v1847 = vsub.f32 %v1775, %v1846
        %v1848 = vand.u32 %v1847, 4294901760
        %v1849 = vsub.f32 %v1847, %v1848
        %v1850 = vand.u32 %v1849, 4294901760
        %1851 = vmatpush.msra.mxu0 %v1850
        %v1852 = vand.u32 %v1773, 4294901760
        %v1853 = vsub.f32 %v1773, %v1852
        %v1854 = vand.u32 %v1853, 4294901760
        %v1855 = vsub.f32 %v1853, %v1854
        %v1856 = vand.u32 %v1855, 4294901760
        %1857 = vmatpush.msra.mxu0 %v1856
        %v1858 = vand.u32 %v1792, 4294901760
        %1859 = vmatmul.f32.gmra.mxu0 %v1858
        %v1860 = vpop.f32.mrf.mxu0
        %v1861 = vadd.f32 %v1822, %v1860
        %v1862 = vand.u32 %v1795, 4294901760
        %1863 = vmatmul.f32.gmra.mxu0 %v1862
        %v1864 = vpop.f32.mrf.mxu0
        %v1865 = vadd.f32 %v1830, %v1864
        %1866 = vdwg.mxu0
        %1867 = vmatpush.msra.mxu0 0.0
        %1868 = vmatpush.msra.mxu0 0.0
        %1869 = vmatpush.msra.mxu0 0.0
        %1870 = vmatpush.msra.mxu0 0.0
        %1871 = vmatpush.msra.mxu0 0.0
        %1872 = vmatpush.msra.mxu0 0.0
        %1873 = vmatpush.msra.mxu0 0.0
        %1874 = vmatpush.msra.mxu0 0.0
        %1875 = vmatpush.msra.mxu0 0.0
        %1876 = vmatpush.msra.mxu0 0.0
        %1877 = vmatpush.msra.mxu0 0.0
        %1878 = vmatpush.msra.mxu0 0.0
        %1879 = vmatpush.msra.mxu0 0.0
        %1880 = vmatpush.msra.mxu0 0.0
        %v1881 = vand.u32 %v1775, 4294901760
        %v1882 = vsub.f32 %v1775, %v1881
        %1883 = vmatpush.msra.mxu0 %v1882
        %v1884 = vand.u32 %v1773, 4294901760
        %v1885 = vsub.f32 %v1773, %v1884
        %1886 = vmatpush.msra.mxu0 %v1885
        %v1887 = vand.u32 %v1792, 4294901760
        %v1888 = vsub.f32 %v1792, %v1887
        %1889 = vmatmul.f32.gmra.mxu0 %v1888
        %v1890 = vpop.f32.mrf.mxu0
        %v1891 = vadd.f32 %v1861, %v1890
        %v1892 = vand.u32 %v1795, 4294901760
        %v1893 = vsub.f32 %v1795, %v1892
        %1894 = vmatmul.f32.gmra.mxu0 %v1893
        %v1895 = vpop.f32.mrf.mxu0
        %v1896 = vadd.f32 %v1865, %v1895
        %1897 = vdwg.mxu0
        %1898 = vmatpush.msra.mxu0 0.0
        %1899 = vmatpush.msra.mxu0 0.0
        %1900 = vmatpush.msra.mxu0 0.0
        %1901 = vmatpush.msra.mxu0 0.0
        %1902 = vmatpush.msra.mxu0 0.0
        %1903 = vmatpush.msra.mxu0 0.0
        %1904 = vmatpush.msra.mxu0 0.0
        %1905 = vmatpush.msra.mxu0 0.0
        %1906 = vmatpush.msra.mxu0 0.0
        %1907 = vmatpush.msra.mxu0 0.0
        %1908 = vmatpush.msra.mxu0 0.0
        %1909 = vmatpush.msra.mxu0 0.0
        %1910 = vmatpush.msra.mxu0 0.0
        %1911 = vmatpush.msra.mxu0 0.0
        %v1912 = vand.u32 %v1775, 4294901760
        %1913 = vmatpush.msra.mxu0 %v1912
        %v1914 = vand.u32 %v1773, 4294901760
        %1915 = vmatpush.msra.mxu0 %v1914
        %v1916 = vand.u32 %v1792, 4294901760
        %v1917 = vsub.f32 %v1792, %v1916
        %v1918 = vand.u32 %v1917, 4294901760
        %1919 = vmatmul.f32.gmra.mxu0 %v1918
        %v1920 = vpop.f32.mrf.mxu0
        %v1921 = vadd.f32 %v1891, %v1920
        %v1922 = vand.u32 %v1795, 4294901760
        %v1923 = vsub.f32 %v1795, %v1922
        %v1924 = vand.u32 %v1923, 4294901760
        %1925 = vmatmul.f32.gmra.mxu0 %v1924
        %v1926 = vpop.f32.mrf.mxu0
        %v1927 = vadd.f32 %v1896, %v1926
        %1928 = vdwg.mxu0
        %1929 = vmatpush.msra.mxu0 0.0
        %1930 = vmatpush.msra.mxu0 0.0
        %1931 = vmatpush.msra.mxu0 0.0
        %1932 = vmatpush.msra.mxu0 0.0
        %1933 = vmatpush.msra.mxu0 0.0
        %1934 = vmatpush.msra.mxu0 0.0
        %1935 = vmatpush.msra.mxu0 0.0
        %1936 = vmatpush.msra.mxu0 0.0
        %1937 = vmatpush.msra.mxu0 0.0
        %1938 = vmatpush.msra.mxu0 0.0
        %1939 = vmatpush.msra.mxu0 0.0
        %1940 = vmatpush.msra.mxu0 0.0
        %1941 = vmatpush.msra.mxu0 0.0
        %1942 = vmatpush.msra.mxu0 0.0
        %v1943 = vand.u32 %v1775, 4294901760
        %v1944 = vsub.f32 %v1775, %v1943
        %v1945 = vand.u32 %v1944, 4294901760
        %1946 = vmatpush.msra.mxu0 %v1945
        %v1947 = vand.u32 %v1773, 4294901760
        %v1948 = vsub.f32 %v1773, %v1947
        %v1949 = vand.u32 %v1948, 4294901760
        %1950 = vmatpush.msra.mxu0 %v1949
        %v1951 = vand.u32 %v1792, 4294901760
        %1952 = vmatmul.f32.gmra.mxu0 %v1951
        %v1953 = vpop.f32.mrf.mxu0
        %v1954 = vadd.f32 %v1921, %v1953
        %v1955 = vand.u32 %v1795, 4294901760
        %1956 = vmatmul.f32.gmra.mxu0 %v1955
        %v1957 = vpop.f32.mrf.mxu0
        %v1958 = vadd.f32 %v1927, %v1957
        %1959 = vdwg.mxu0
        %1960 = vmatpush.msra.mxu0 0.0
        %1961 = vmatpush.msra.mxu0 0.0
        %1962 = vmatpush.msra.mxu0 0.0
        %1963 = vmatpush.msra.mxu0 0.0
        %1964 = vmatpush.msra.mxu0 0.0
        %1965 = vmatpush.msra.mxu0 0.0
        %1966 = vmatpush.msra.mxu0 0.0
        %1967 = vmatpush.msra.mxu0 0.0
        %1968 = vmatpush.msra.mxu0 0.0
        %1969 = vmatpush.msra.mxu0 0.0
        %1970 = vmatpush.msra.mxu0 0.0
        %1971 = vmatpush.msra.mxu0 0.0
        %1972 = vmatpush.msra.mxu0 0.0
        %1973 = vmatpush.msra.mxu0 0.0
        %v1974 = vand.u32 %v1775, 4294901760
        %1975 = vmatpush.msra.mxu0 %v1974
        %v1976 = vand.u32 %v1773, 4294901760
        %1977 = vmatpush.msra.mxu0 %v1976
        %v1978 = vand.u32 %v1792, 4294901760
        %1979 = vmatmul.f32.gmra.mxu0 %v1978
        %v1980 = vpop.f32.mrf.mxu0
        %v1981 = vadd.f32 %v1954, %v1980
        %v1982 = vand.u32 %v1795, 4294901760
        %1983 = vmatmul.f32.gmra.mxu0 %v1982
        %v1984 = vpop.f32.mrf.mxu0
        %v1985 = vadd.f32 %v1958, %v1984
        %1986 = vdwg.mxu0
        %1987 = vmatpush.msra.mxu0 0.0
        %1988 = vmatpush.msra.mxu0 0.0
        %1989 = vmatpush.msra.mxu0 0.0
        %1990 = vmatpush.msra.mxu0 0.0
        %1991 = vmatpush.msra.mxu0 0.0
        %1992 = vmatpush.msra.mxu0 0.0
        %1993 = vmatpush.msra.mxu0 0.0
        %1994 = vmatpush.msra.mxu0 0.0
        %1995 = vmatpush.msra.mxu0 0.0
        %1996 = vmatpush.msra.mxu0 0.0
        %1997 = vmatpush.msra.mxu0 0.0
        %1998 = vmatpush.msra.mxu0 0.0
        %1999 = vmatpush.msra.mxu0 0.0
        %2000 = vmatpush.msra.mxu0 0.0
        %v2001 = vand.u32 %v1776, 4294901760
        %2002 = vmatpush.msra.mxu0 %v2001
        %v2003 = vand.u32 %v1774, 4294901760
        %2004 = vmatpush.msra.mxu0 %v2003
        %v2005 = vand.u32 %v1792, 4294901760
        %v2006 = vsub.f32 %v1792, %v2005
        %v2007 = vand.u32 %v2006, 4294901760
        %v2008 = vsub.f32 %v2006, %v2007
        %v2009 = vand.u32 %v2008, 4294901760
        %2010 = vmatmul.f32.gmra.mxu0 %v2009
        %v2011 = vpop.f32.mrf.mxu0
        %v2012 = vadd.f32 %v1784, %v2011
        %v2013 = vand.u32 %v1795, 4294901760
        %v2014 = vsub.f32 %v1795, %v2013
        %v2015 = vand.u32 %v2014, 4294901760
        %v2016 = vsub.f32 %v2014, %v2015
        %v2017 = vand.u32 %v2016, 4294901760
        %2018 = vmatmul.f32.gmra.mxu0 %v2017
        %v2019 = vpop.f32.mrf.mxu0
        %v2020 = vadd.f32 %v1789, %v2019
        %2021 = vdwg.mxu0
        %2022 = vmatpush.msra.mxu0 0.0
        %2023 = vmatpush.msra.mxu0 0.0
        %2024 = vmatpush.msra.mxu0 0.0
        %2025 = vmatpush.msra.mxu0 0.0
        %2026 = vmatpush.msra.mxu0 0.0
        %2027 = vmatpush.msra.mxu0 0.0
        %2028 = vmatpush.msra.mxu0 0.0
        %2029 = vmatpush.msra.mxu0 0.0
        %2030 = vmatpush.msra.mxu0 0.0
        %2031 = vmatpush.msra.mxu0 0.0
        %2032 = vmatpush.msra.mxu0 0.0
        %2033 = vmatpush.msra.mxu0 0.0
        %2034 = vmatpush.msra.mxu0 0.0
        %2035 = vmatpush.msra.mxu0 0.0
        %v2036 = vand.u32 %v1776, 4294901760
        %v2037 = vsub.f32 %v1776, %v2036
        %v2038 = vand.u32 %v2037, 4294901760
        %v2039 = vsub.f32 %v2037, %v2038
        %v2040 = vand.u32 %v2039, 4294901760
        %2041 = vmatpush.msra.mxu0 %v2040
        %v2042 = vand.u32 %v1774, 4294901760
        %v2043 = vsub.f32 %v1774, %v2042
        %v2044 = vand.u32 %v2043, 4294901760
        %v2045 = vsub.f32 %v2043, %v2044
        %v2046 = vand.u32 %v2045, 4294901760
        %2047 = vmatpush.msra.mxu0 %v2046
        %v2048 = vand.u32 %v1792, 4294901760
        %2049 = vmatmul.f32.gmra.mxu0 %v2048
        %v2050 = vpop.f32.mrf.mxu0
        %v2051 = vadd.f32 %v2012, %v2050
        %v2052 = vand.u32 %v1795, 4294901760
        %2053 = vmatmul.f32.gmra.mxu0 %v2052
        %v2054 = vpop.f32.mrf.mxu0
        %v2055 = vadd.f32 %v2020, %v2054
        %2056 = vdwg.mxu0
        %2057 = vmatpush.msra.mxu0 0.0
        %2058 = vmatpush.msra.mxu0 0.0
        %2059 = vmatpush.msra.mxu0 0.0
        %2060 = vmatpush.msra.mxu0 0.0
        %2061 = vmatpush.msra.mxu0 0.0
        %2062 = vmatpush.msra.mxu0 0.0
        %2063 = vmatpush.msra.mxu0 0.0
        %2064 = vmatpush.msra.mxu0 0.0
        %2065 = vmatpush.msra.mxu0 0.0
        %2066 = vmatpush.msra.mxu0 0.0
        %2067 = vmatpush.msra.mxu0 0.0
        %2068 = vmatpush.msra.mxu0 0.0
        %2069 = vmatpush.msra.mxu0 0.0
        %2070 = vmatpush.msra.mxu0 0.0
        %v2071 = vand.u32 %v1776, 4294901760
        %v2072 = vsub.f32 %v1776, %v2071
        %2073 = vmatpush.msra.mxu0 %v2072
        %v2074 = vand.u32 %v1774, 4294901760
        %v2075 = vsub.f32 %v1774, %v2074
        %2076 = vmatpush.msra.mxu0 %v2075
        %v2077 = vand.u32 %v1792, 4294901760
        %v2078 = vsub.f32 %v1792, %v2077
        %2079 = vmatmul.f32.gmra.mxu0 %v2078
        %v2080 = vpop.f32.mrf.mxu0
        %v2081 = vadd.f32 %v2051, %v2080
        %v2082 = vand.u32 %v1795, 4294901760
        %v2083 = vsub.f32 %v1795, %v2082
        %2084 = vmatmul.f32.gmra.mxu0 %v2083
        %v2085 = vpop.f32.mrf.mxu0
        %v2086 = vadd.f32 %v2055, %v2085
        %2087 = vdwg.mxu0
        %2088 = vmatpush.msra.mxu0 0.0
        %2089 = vmatpush.msra.mxu0 0.0
        %2090 = vmatpush.msra.mxu0 0.0
        %2091 = vmatpush.msra.mxu0 0.0
        %2092 = vmatpush.msra.mxu0 0.0
        %2093 = vmatpush.msra.mxu0 0.0
        %2094 = vmatpush.msra.mxu0 0.0
        %2095 = vmatpush.msra.mxu0 0.0
        %2096 = vmatpush.msra.mxu0 0.0
        %2097 = vmatpush.msra.mxu0 0.0
        %2098 = vmatpush.msra.mxu0 0.0
        %2099 = vmatpush.msra.mxu0 0.0
        %2100 = vmatpush.msra.mxu0 0.0
        %2101 = vmatpush.msra.mxu0 0.0
        %v2102 = vand.u32 %v1776, 4294901760
        %2103 = vmatpush.msra.mxu0 %v2102
        %v2104 = vand.u32 %v1774, 4294901760
        %2105 = vmatpush.msra.mxu0 %v2104
        %v2106 = vand.u32 %v1792, 4294901760
        %v2107 = vsub.f32 %v1792, %v2106
        %v2108 = vand.u32 %v2107, 4294901760
        %2109 = vmatmul.f32.gmra.mxu0 %v2108
        %v2110 = vpop.f32.mrf.mxu0
        %v2111 = vadd.f32 %v2081, %v2110
        %v2112 = vand.u32 %v1795, 4294901760
        %v2113 = vsub.f32 %v1795, %v2112
        %v2114 = vand.u32 %v2113, 4294901760
        %2115 = vmatmul.f32.gmra.mxu0 %v2114
        %v2116 = vpop.f32.mrf.mxu0
        %v2117 = vadd.f32 %v2086, %v2116
        %2118 = vdwg.mxu0
        %2119 = vmatpush.msra.mxu0 0.0
        %2120 = vmatpush.msra.mxu0 0.0
        %2121 = vmatpush.msra.mxu0 0.0
        %2122 = vmatpush.msra.mxu0 0.0
        %2123 = vmatpush.msra.mxu0 0.0
        %2124 = vmatpush.msra.mxu0 0.0
        %2125 = vmatpush.msra.mxu0 0.0
        %2126 = vmatpush.msra.mxu0 0.0
        %2127 = vmatpush.msra.mxu0 0.0
        %2128 = vmatpush.msra.mxu0 0.0
        %2129 = vmatpush.msra.mxu0 0.0
        %2130 = vmatpush.msra.mxu0 0.0
        %2131 = vmatpush.msra.mxu0 0.0
        %2132 = vmatpush.msra.mxu0 0.0
        %v2133 = vand.u32 %v1776, 4294901760
        %v2134 = vsub.f32 %v1776, %v2133
        %v2135 = vand.u32 %v2134, 4294901760
        %2136 = vmatpush.msra.mxu0 %v2135
        %v2137 = vand.u32 %v1774, 4294901760
        %v2138 = vsub.f32 %v1774, %v2137
        %v2139 = vand.u32 %v2138, 4294901760
        %2140 = vmatpush.msra.mxu0 %v2139
        %v2141 = vand.u32 %v1792, 4294901760
        %2142 = vmatmul.f32.gmra.mxu0 %v2141
        %v2143 = vpop.f32.mrf.mxu0
        %v2144 = vadd.f32 %v2111, %v2143
        %v2145 = vand.u32 %v1795, 4294901760
        %2146 = vmatmul.f32.gmra.mxu0 %v2145
        %v2147 = vpop.f32.mrf.mxu0
        %v2148 = vadd.f32 %v2117, %v2147
        %2149 = vdwg.mxu0
        %2150 = vmatpush.msra.mxu0 0.0
        %2151 = vmatpush.msra.mxu0 0.0
        %2152 = vmatpush.msra.mxu0 0.0
        %2153 = vmatpush.msra.mxu0 0.0
        %2154 = vmatpush.msra.mxu0 0.0
        %2155 = vmatpush.msra.mxu0 0.0
        %2156 = vmatpush.msra.mxu0 0.0
        %2157 = vmatpush.msra.mxu0 0.0
        %2158 = vmatpush.msra.mxu0 0.0
        %2159 = vmatpush.msra.mxu0 0.0
        %2160 = vmatpush.msra.mxu0 0.0
        %2161 = vmatpush.msra.mxu0 0.0
        %2162 = vmatpush.msra.mxu0 0.0
        %2163 = vmatpush.msra.mxu0 0.0
        %v2164 = vand.u32 %v1776, 4294901760
        %2165 = vmatpush.msra.mxu0 %v2164
        %v2166 = vand.u32 %v1774, 4294901760
        %2167 = vmatpush.msra.mxu0 %v2166
        %v2168 = vand.u32 %v1792, 4294901760
        %2169 = vmatmul.f32.gmra.mxu0 %v2168
        %v2170 = vpop.f32.mrf.mxu0
        %v2171 = vadd.f32 %v2144, %v2170
        %v2172 = vand.u32 %v1795, 4294901760
        %2173 = vmatmul.f32.gmra.mxu0 %v2172
        %v2174 = vpop.f32.mrf.mxu0
        %v2175 = vadd.f32 %v2148, %v2174
        %2176 = vdwg.mxu0
        %v2177 = vadd.f32 %v531, %v1981
        %v2178 = vadd.f32 %v532, %v2171
        %v2179 = vadd.f32 %v533, %v1985
        %v2180 = vadd.f32 %v534, %v2175
        %v2182 = vperm.slane %v535, 0
        %v2183 = vperm.slane %v535, 1
        %v2186 = vmul.f32 %v2177, %v2182
        %v2187 = vmul.f32 %v2178, %v2183
        %v2188 = vmul.f32 %v2179, %v2182
        %v2189 = vmul.f32 %v2180, %v2183
        %2190 = vst [vmem:[%s495] sm:$0xff] %v2186
        %2191 = vst [vmem:[%s495 + $0x8] sm:$0xff] %v2187
        %2192 = vst [vmem:[%s495 + $0x10] sm:$0xff] %v2188
        %2193 = vst [vmem:[%s495 + $0x18] sm:$0xff] %v2189
        %s2194 = sand.u32 %s263, 1
        %s2195 = scalar_lea.sflag [#allocation4], %s2194
        %s2196 = sand.u32 %s263, 1
        %s2197 = smul.addr %s2196, 32
        %s2198 = scalar_lea.vmem [#allocation10], %s2197
        // Predicated region
        $region69: #{tpu_custom_call.1} parent=51 // pred_check
          %p2199 = pneg %p273
        $region70: #{tpu_custom_call.1} parent=51 // pred_check_branch
          %2201 = sbr.rel (%p2199) target = $region72
        $region71: #{tpu_custom_call.1} parent=51 // pred_region
          %s2202 = smul.u32 2, %s34
          %2204 = vsyncadd %s2195, 0
          %s2205 = smul.addr %s33, 8
          %s2206 = sadd.s32 %s2202, %s2205
          %s2207 = smul.addr %s2206, 8
          %s2208 = scalar_lea.hbm %s8, %s2207
          %s2209 = sshll.u32 %s2198, 4
          %s2210 = int_to_ptr.vmem [resolvable:$true] %s2209
          %s2211 = sshll.u32 %s2208, 4
          %s2212 = int_to_ptr.hbm [resolvable:$true] %s2211
          %2217 = dma.vmem_to_hbm [thread:$0]  %s2210, 512, %s2212, %s2195, 256, 512, 16
        $region72: #{tpu_custom_call.1} parent=51 // pred_fallthru
          _
      $region52: #{tpu_custom_call.1} parent=5 // pred_fallthru
        _
      %p2218 = scmp.le.s32.totalorder 2, %s24
      // Predicated region
      $region73: #{tpu_custom_call.1} parent=5 // pred_check
        %p2219 = pneg %p2218
      $region74: #{tpu_custom_call.1} parent=5 // pred_check_branch
        %2221 = sbr.rel (%p2219) target = $region76
      $region75: #{tpu_custom_call.1} parent=5 // pred_region
        %s2222 = ssub.s32 %s24, 2
        // Predicated region
        $region77: #{tpu_custom_call.1} parent=75 // pred_check
          %p2223 = pneg %p279
        $region78: #{tpu_custom_call.1} parent=75 // pred_check_branch
          %2225 = sbr.rel (%p2223) target = $region80
        $region79: #{tpu_custom_call.1} parent=75 // pred_region
          %s2226 = sand.u32 %s264, 1
          %s2227 = scalar_lea.sflag [#allocation4], %s2226
          %s2228 = sand.u32 %s264, 1
          %s2229 = smul.addr %s2228, 32
          %s2230 = scalar_lea.vmem [#allocation10], %s2229
          %2232 = dma.done %s2227, 512
        $region80: #{tpu_custom_call.1} parent=75 // pred_fallthru
          _
      $region76: #{tpu_custom_call.1} parent=5 // pred_fallthru
        _
    $region6: #{tpu_custom_call.1} parent=1 // loop_footer
      %s28 = sadd.s32 1, %s24
    $region7: #{tpu_custom_call.1} parent=1 // loop_footer_branch
      %23 = sbr.rel target = $region3
    $region8: #{tpu_custom_call.1} parent=1 // loop_exit
      _
    %2233 = vsyncpa [#allocation3], 1
    %s2234 = scalar_lea.sflag [#allocation3], 1
    %2235 = vsyncpa %s2234, 1
    %2236 = vsyncpa [#allocation6], 1
    %s2237 = scalar_lea.sflag [#allocation6], 1
    %2238 = vsyncpa %s2237, 1
    %2239 = vsyncpa [#allocation9], 1
    %2240 = vsyncpa [#allocation4], 1
    %s2241 = scalar_lea.sflag [#allocation4], 1
    %2242 = vsyncpa %s2241, 1

</llo_original>
